<compile_context>
chip_gen: v5e
topology: v5e:2x2
jax: 0.10.0
libtpu: 0.0.40
codegen_flags: <defaults>
</compile_context>

<pallas_src>
import functools

import jax
import jax.numpy as jnp
from jax.experimental import pallas as pl
from jax.experimental.pallas import tpu as pltpu


def _round_up(x, m):
    return ((x + m - 1) // m) * m


def _default_num_steps():
    # >= 2 parallel grid steps only pays off on chips with 2 TensorCores (v7x);
    # on v5e/v6e (and CPU interpret) a 1-step grid minimizes per-step overhead.
    try:
        kind = jax.devices()[0].device_kind.lower()
        if "v7" in kind:
            return 2
    except Exception:
        pass
    return 1


def _actor_sto_kernel(state_ref, eps_ref,
                      w1_ref, b1_ref, w2_ref, b2_ref, w3_ref, b3_ref,
                      wh_ref, bh_ref,
                      out_ref, *, out_dim):
    cdt = w1_ref.dtype  # bf16 compute dtype for the MXU operands

    x = state_ref[...].astype(cdt)

    # Fully connected trunk: Linear -> ReLU (x3); bf16 operands, f32 accumulate.
    h = jnp.dot(x, w1_ref[...], preferred_element_type=jnp.float32) + b1_ref[...]
    h = jnp.maximum(h, 0.0).astype(cdt)
    h = jnp.dot(h, w2_ref[...], preferred_element_type=jnp.float32) + b2_ref[...]
    h = jnp.maximum(h, 0.0).astype(cdt)
    h = jnp.dot(h, w3_ref[...], preferred_element_type=jnp.float32) + b3_ref[...]
    h = jnp.maximum(h, 0.0).astype(cdt)

    # Fused heads: a single matmul produces [mu_pre | log_std_pre]; one tanh.
    head = jnp.dot(h, wh_ref[...], preferred_element_type=jnp.float32) + bh_ref[...]
    head = jnp.tanh(head)
    mu = head[:, :out_dim]
    std = jnp.exp(head[:, out_dim:])

    # Reparameterized sample with externally supplied eps ~ N(0, 1).
    action = mu + std * eps_ref[...]

    # Direct sub-slice stores into the lane-dense output slab.
    # Pad lanes [3*out_dim:128] are never read by the wrapper.
    out_ref[:, 0 * out_dim:1 * out_dim] = action
    out_ref[:, 1 * out_dim:2 * out_dim] = mu
    out_ref[:, 2 * out_dim:3 * out_dim] = std


def actor_sto_forward(state, kparams, noise_key, *, num_steps=None):
    """ActorSto forward as one Pallas TPU kernel.

    Returns (action, mu, std); (mu, std) are the Normal distribution parameters
    (the PyTorch module's `dist`), action == Normal(mu, std).sample().
    """
    B, input_dim = state.shape
    out_dim = kparams["bhead"].shape[1] // 2
    out_w = _round_up(3 * out_dim, 128)            # lane-dense output slab width

    if num_steps is None:
        num_steps = _default_num_steps()
    num_steps = max(1, min(num_steps, -(-B // 8)))

    # Adaptive batch tiling: num_steps grid steps, each a multiple of 8 rows.
    tile_b = _round_up(-(-B // num_steps), 8)
    b_pad = tile_b * num_steps
    if b_pad != B:
        state = jnp.pad(state, ((0, b_pad - B), (0, 0)))
    grid = (num_steps,)

    # Standard-normal noise generated outside the kernel (reparameterization).
    eps = jax.random.normal(noise_key, (b_pad, out_dim), jnp.float32)

    vmem = pltpu.MemorySpace.VMEM

    def _tile_map(i):     # activations / noise / outputs march with the grid
        return (i, 0)

    def _const_map(i):    # weights & biases stay VMEM-resident across the grid
        return (0, 0)

    weight_keys = ("w1", "b1", "w2", "b2", "w3", "b3", "whead", "bhead")
    in_specs = [pl.BlockSpec((tile_b, input_dim), _tile_map, memory_space=vmem),
                pl.BlockSpec((tile_b, out_dim), _tile_map, memory_space=vmem)]
    in_specs += [pl.BlockSpec(kparams[k].shape, _const_map, memory_space=vmem)
                 for k in weight_keys]

    grid_spec = pltpu.PrefetchScalarGridSpec(
        num_scalar_prefetch=0,
        grid=grid,
        in_specs=in_specs,
        out_specs=pl.BlockSpec((tile_b, out_w), _tile_map, memory_space=vmem),
    )

    weight_bytes = sum(int(kparams[k].size) * jnp.dtype(kparams[k].dtype).itemsize
                       for k in weight_keys)
    cost = pl.CostEstimate(
        flops=2 * b_pad * (input_dim * 128 + 128 * 128 + 128 * 64 + 64 * 2 * out_dim),
        transcendentals=b_pad * 3 * out_dim,
        bytes_accessed=b_pad * (input_dim + out_dim + out_w) * 4 + weight_bytes,
    )

    out = pl.pallas_call(
        functools.partial(_actor_sto_kernel, out_dim=out_dim),
        out_shape=jax.ShapeDtypeStruct((b_pad, out_w), jnp.float32),
        grid_spec=grid_spec,
        compiler_params=pltpu.CompilerParams(
            dimension_semantics=("parallel",)),
        cost_estimate=cost,
    )(state, eps, *(kparams[k] for k in weight_keys))

    action = out[:B, 0 * out_dim:1 * out_dim]
    mu = out[:B, 1 * out_dim:2 * out_dim]
    std = out[:B, 2 * out_dim:3 * out_dim]
    return action, mu, std


def init_params(key, input_dim, output_dim):
    """Init mimicking torch.nn.Linear default (uniform +/- 1/sqrt(fan_in)).

    Weights stored pre-transposed as [in, out]; biases as [1, out]; all f32.
    """
    dims = [(input_dim, 128), (128, 128), (128, 64),
            (64, output_dim), (64, output_dim)]
    names = ["1", "2", "3", "mu", "ls"]
    params = {}
    for (fan_in, fan_out), name in zip(dims, names):
        key, kw, kb = jax.random.split(key, 3)
        bound = float(1.0 / (fan_in ** 0.5))
        params[f"w{name}"] = jax.random.uniform(
            kw, (fan_in, fan_out), jnp.float32, -bound, bound)
        params[f"b{name}"] = jax.random.uniform(
            kb, (1, fan_out), jnp.float32, -bound, bound)
    return params


def pack_params(params, compute_dtype=jnp.bfloat16):
    """Pack the two head Linears into one [64, 2*out_dim] matmul; weights bf16."""
    return {
        "w1": params["w1"].astype(compute_dtype), "b1": params["b1"],
        "w2": params["w2"].astype(compute_dtype), "b2": params["b2"],
        "w3": params["w3"].astype(compute_dtype), "b3": params["b3"],
        "whead": jnp.concatenate([params["wmu"], params["wls"]],
                                 axis=1).astype(compute_dtype),
        "bhead": jnp.concatenate([params["bmu"], params["bls"]], axis=1),
    }


def actor_sto_reference(state, params):
    """Pure-JAX f32 reference for the deterministic part (mu, std)."""
    hp = jax.lax.Precision.HIGHEST
    h = jnp.maximum(jnp.dot(state, params["w1"], precision=hp) + params["b1"], 0.0)
    h = jnp.maximum(jnp.dot(h, params["w2"], precision=hp) + params["b2"], 0.0)
    h = jnp.maximum(jnp.dot(h, params["w3"], precision=hp) + params["b3"], 0.0)
    mu = jnp.tanh(jnp.dot(h, params["wmu"], precision=hp) + params["bmu"])
    std = jnp.exp(jnp.tanh(jnp.dot(h, params["wls"], precision=hp) + params["bls"]))
    return mu, std


if __name__ == "__main__":
    # Batched (launch overhead dominates tiny batches): B=512, single grid step
    # on 1-TC chips, 2 parallel steps on v7x.
    B = 512
    INPUT_DIM = 32
    OUTPUT_DIM = 8

    key = jax.random.PRNGKey(0)
    k_state, k_params, k_noise = jax.random.split(key, 3)

    state = jax.random.normal(k_state, (B, INPUT_DIM), jnp.float32)
    params = init_params(k_params, INPUT_DIM, OUTPUT_DIM)
    kparams = pack_params(params)

    action, mu, std = actor_sto_forward(state, kparams, k_noise)
    jax.block_until_ready((action, mu, std))

    # Shape / range sanity.
    assert action.shape == (B, OUTPUT_DIM)
    assert mu.shape == (B, OUTPUT_DIM)
    assert std.shape == (B, OUTPUT_DIM)
    assert bool(jnp.all(std > 0.0))
    assert bool(jnp.all(jnp.abs(mu) <= 1.0 + 1e-6))

    # Deterministic part vs. pure-JAX f32 reference (tolerance covers the bf16
    # MXU-operand path).
    mu_ref, std_ref = actor_sto_reference(state, params)
    assert bool(jnp.allclose(mu, mu_ref, atol=2e-2, rtol=2e-2))
    assert bool(jnp.allclose(std, std_ref, atol=2e-2, rtol=2e-2))

    # Stochastic part: (action - mu) / std should look like N(0, 1).
    z = (action - mu) / std
    assert abs(float(jnp.mean(z))) < 0.2
    assert 0.7 < float(jnp.std(z)) < 1.3

    print("KERNEL_OK")
</pallas_src>

<mosaic_0001>
module attributes {stable_mosaic.version = 11 : i64} {
  func.func @_actor_sto_kernel(%arg0: i32, %arg1: memref<512x32xf32, #tpu.memory_space<vmem>>, %arg2: memref<512x8xf32, #tpu.memory_space<vmem>>, %arg3: memref<32x128xbf16, #tpu.memory_space<vmem>>, %arg4: memref<1x128xf32, #tpu.memory_space<vmem>>, %arg5: memref<128x128xbf16, #tpu.memory_space<vmem>>, %arg6: memref<1x128xf32, #tpu.memory_space<vmem>>, %arg7: memref<128x64xbf16, #tpu.memory_space<vmem>>, %arg8: memref<1x64xf32, #tpu.memory_space<vmem>>, %arg9: memref<64x16xbf16, #tpu.memory_space<vmem>>, %arg10: memref<1x16xf32, #tpu.memory_space<vmem>>, %arg11: memref<512x128xf32, #tpu.memory_space<vmem>>) attributes {dimension_semantics = [#tpu.dimension_semantics<parallel>], iteration_bounds = array<i64: 1>, scalar_prefetch = 0 : i64, scratch_operands = 0 : i64, tpu.core_type = #tpu.core_type<tc>, window_params = [{transform_indices = @transform_0, window_bounds = array<i64: 512, 32>}, {transform_indices = @transform_1, window_bounds = array<i64: 512, 8>}, {pipeline_mode = #tpu.pipeline_mode<synchronous>, transform_indices = @transform_2, window_bounds = array<i64: 32, 128>}, {pipeline_mode = #tpu.pipeline_mode<synchronous>, transform_indices = @transform_3, window_bounds = array<i64: 1, 128>}, {pipeline_mode = #tpu.pipeline_mode<synchronous>, transform_indices = @transform_4, window_bounds = array<i64: 128, 128>}, {pipeline_mode = #tpu.pipeline_mode<synchronous>, transform_indices = @transform_5, window_bounds = array<i64: 1, 128>}, {pipeline_mode = #tpu.pipeline_mode<synchronous>, transform_indices = @transform_6, window_bounds = array<i64: 128, 64>}, {pipeline_mode = #tpu.pipeline_mode<synchronous>, transform_indices = @transform_7, window_bounds = array<i64: 1, 64>}, {pipeline_mode = #tpu.pipeline_mode<synchronous>, transform_indices = @transform_8, window_bounds = array<i64: 64, 16>}, {pipeline_mode = #tpu.pipeline_mode<synchronous>, transform_indices = @transform_9, window_bounds = array<i64: 1, 16>}, {transform_indices = @transform_10, window_bounds = array<i64: 512, 128>}]} {
    %c0 = arith.constant 0 : index
    %c0_0 = arith.constant 0 : index
    %0 = vector.load %arg1[%c0, %c0_0] : memref<512x32xf32, #tpu.memory_space<vmem>>, vector<512x32xf32>
    %1 = arith.truncf %0 : vector<512x32xf32> to vector<512x32xbf16>
    %c0_1 = arith.constant 0 : index
    %c0_2 = arith.constant 0 : index
    %2 = vector.load %arg3[%c0_1, %c0_2] : memref<32x128xbf16, #tpu.memory_space<vmem>>, vector<32x128xbf16>
    %cst = arith.constant dense<0.000000e+00> : vector<512x128xf32>
    %3 = tpu.matmul %1, %2, %cst {dimension_numbers = #tpu.dot_dimension_numbers<[1], [0], [0], [1], [0, 0, 1, 1], [], []>} : vector<512x32xbf16>, vector<32x128xbf16>, vector<512x128xf32> -> vector<512x128xf32>
    %c0_3 = arith.constant 0 : index
    %c0_4 = arith.constant 0 : index
    %4 = vector.load %arg4[%c0_3, %c0_4] : memref<1x128xf32, #tpu.memory_space<vmem>>, vector<1x128xf32>
    %5 = vector.broadcast %4 : vector<1x128xf32> to vector<512x128xf32>
    %6 = arith.addf %3, %5 : vector<512x128xf32>
    %cst_5 = arith.constant 0.000000e+00 : f32
    %7 = vector.broadcast %cst_5 : f32 to vector<512x128xf32>
    %8 = arith.maximumf %6, %7 : vector<512x128xf32>
    %9 = arith.truncf %8 : vector<512x128xf32> to vector<512x128xbf16>
    %c0_6 = arith.constant 0 : index
    %c0_7 = arith.constant 0 : index
    %10 = vector.load %arg5[%c0_6, %c0_7] : memref<128x128xbf16, #tpu.memory_space<vmem>>, vector<128x128xbf16>
    %cst_8 = arith.constant dense<0.000000e+00> : vector<512x128xf32>
    %11 = tpu.matmul %9, %10, %cst_8 {dimension_numbers = #tpu.dot_dimension_numbers<[1], [0], [0], [1], [0, 0, 1, 1], [], []>} : vector<512x128xbf16>, vector<128x128xbf16>, vector<512x128xf32> -> vector<512x128xf32>
    %c0_9 = arith.constant 0 : index
    %c0_10 = arith.constant 0 : index
    %12 = vector.load %arg6[%c0_9, %c0_10] : memref<1x128xf32, #tpu.memory_space<vmem>>, vector<1x128xf32>
    %13 = vector.broadcast %12 : vector<1x128xf32> to vector<512x128xf32>
    %14 = arith.addf %11, %13 : vector<512x128xf32>
    %cst_11 = arith.constant 0.000000e+00 : f32
    %15 = vector.broadcast %cst_11 : f32 to vector<512x128xf32>
    %16 = arith.maximumf %14, %15 : vector<512x128xf32>
    %17 = arith.truncf %16 : vector<512x128xf32> to vector<512x128xbf16>
    %c0_12 = arith.constant 0 : index
    %c0_13 = arith.constant 0 : index
    %18 = vector.load %arg7[%c0_12, %c0_13] : memref<128x64xbf16, #tpu.memory_space<vmem>>, vector<128x64xbf16>
    %cst_14 = arith.constant dense<0.000000e+00> : vector<512x64xf32>
    %19 = tpu.matmul %17, %18, %cst_14 {dimension_numbers = #tpu.dot_dimension_numbers<[1], [0], [0], [1], [0, 0, 1, 1], [], []>} : vector<512x128xbf16>, vector<128x64xbf16>, vector<512x64xf32> -> vector<512x64xf32>
    %c0_15 = arith.constant 0 : index
    %c0_16 = arith.constant 0 : index
    %20 = vector.load %arg8[%c0_15, %c0_16] : memref<1x64xf32, #tpu.memory_space<vmem>>, vector<1x64xf32>
    %21 = vector.broadcast %20 : vector<1x64xf32> to vector<512x64xf32>
    %22 = arith.addf %19, %21 : vector<512x64xf32>
    %cst_17 = arith.constant 0.000000e+00 : f32
    %23 = vector.broadcast %cst_17 : f32 to vector<512x64xf32>
    %24 = arith.maximumf %22, %23 : vector<512x64xf32>
    %25 = arith.truncf %24 : vector<512x64xf32> to vector<512x64xbf16>
    %c0_18 = arith.constant 0 : index
    %c0_19 = arith.constant 0 : index
    %26 = vector.load %arg9[%c0_18, %c0_19] : memref<64x16xbf16, #tpu.memory_space<vmem>>, vector<64x16xbf16>
    %cst_20 = arith.constant dense<0.000000e+00> : vector<512x16xf32>
    %27 = tpu.matmul %25, %26, %cst_20 {dimension_numbers = #tpu.dot_dimension_numbers<[1], [0], [0], [1], [0, 0, 1, 1], [], []>} : vector<512x64xbf16>, vector<64x16xbf16>, vector<512x16xf32> -> vector<512x16xf32>
    %c0_21 = arith.constant 0 : index
    %c0_22 = arith.constant 0 : index
    %28 = vector.load %arg10[%c0_21, %c0_22] : memref<1x16xf32, #tpu.memory_space<vmem>>, vector<1x16xf32>
    %29 = vector.broadcast %28 : vector<1x16xf32> to vector<512x16xf32>
    %30 = arith.addf %27, %29 : vector<512x16xf32>
    %31 = math.tanh %30 : vector<512x16xf32>
    %32 = vector.extract_strided_slice %31 {offsets = [0, 0], sizes = [512, 8], strides = [1, 1]} : vector<512x16xf32> to vector<512x8xf32>
    %33 = vector.extract_strided_slice %31 {offsets = [0, 8], sizes = [512, 8], strides = [1, 1]} : vector<512x16xf32> to vector<512x8xf32>
    %34 = math.exp %33 : vector<512x8xf32>
    %c0_23 = arith.constant 0 : index
    %c0_24 = arith.constant 0 : index
    %35 = vector.load %arg2[%c0_23, %c0_24] : memref<512x8xf32, #tpu.memory_space<vmem>>, vector<512x8xf32>
    %36 = arith.mulf %34, %35 : vector<512x8xf32>
    %37 = arith.addf %32, %36 : vector<512x8xf32>
    %c0_25 = arith.constant 0 : index
    %c0_26 = arith.constant 0 : index
    %38 = vector.load %arg11[%c0_25, %c0_26] : memref<512x128xf32, #tpu.memory_space<vmem>>, vector<512x8xf32>
    tpu.vector_store %arg11[%c0_25, %c0_26], %37 {strides = array<i32>} : memref<512x128xf32, #tpu.memory_space<vmem>>, vector<512x8xf32>,
    %c0_27 = arith.constant 0 : index
    %c8 = arith.constant 8 : index
    %39 = vector.load %arg11[%c0_27, %c8] : memref<512x128xf32, #tpu.memory_space<vmem>>, vector<512x8xf32>
    tpu.vector_store %arg11[%c0_27, %c8], %32 {strides = array<i32>} : memref<512x128xf32, #tpu.memory_space<vmem>>, vector<512x8xf32>,
    %c0_28 = arith.constant 0 : index
    %c16 = arith.constant 16 : index
    %40 = vector.load %arg11[%c0_28, %c16] : memref<512x128xf32, #tpu.memory_space<vmem>>, vector<512x8xf32>
    tpu.vector_store %arg11[%c0_28, %c16], %34 {strides = array<i32>} : memref<512x128xf32, #tpu.memory_space<vmem>>, vector<512x8xf32>,
    return
  }
  func.func @transform_0(%arg0: i32) -> (i32, i32) {
    %c0_i32 = arith.constant 0 : i32
    %c0_i32_0 = arith.constant 0 : i32
    return %arg0, %c0_i32 : i32, i32
  }
  func.func @transform_1(%arg0: i32) -> (i32, i32) {
    %c0_i32 = arith.constant 0 : i32
    %c0_i32_0 = arith.constant 0 : i32
    return %arg0, %c0_i32 : i32, i32
  }
  func.func @transform_2(%arg0: i32) -> (i32, i32) {
    %c0_i32 = arith.constant 0 : i32
    %c0_i32_0 = arith.constant 0 : i32
    %c0_i32_1 = arith.constant 0 : i32
    return %c0_i32, %c0_i32_0 : i32, i32
  }
  func.func @transform_3(%arg0: i32) -> (i32, i32) {
    %c0_i32 = arith.constant 0 : i32
    %c0_i32_0 = arith.constant 0 : i32
    %c0_i32_1 = arith.constant 0 : i32
    return %c0_i32, %c0_i32_0 : i32, i32
  }
  func.func @transform_4(%arg0: i32) -> (i32, i32) {
    %c0_i32 = arith.constant 0 : i32
    %c0_i32_0 = arith.constant 0 : i32
    %c0_i32_1 = arith.constant 0 : i32
    return %c0_i32, %c0_i32_0 : i32, i32
  }
  func.func @transform_5(%arg0: i32) -> (i32, i32) {
    %c0_i32 = arith.constant 0 : i32
    %c0_i32_0 = arith.constant 0 : i32
    %c0_i32_1 = arith.constant 0 : i32
    return %c0_i32, %c0_i32_0 : i32, i32
  }
  func.func @transform_6(%arg0: i32) -> (i32, i32) {
    %c0_i32 = arith.constant 0 : i32
    %c0_i32_0 = arith.constant 0 : i32
    %c0_i32_1 = arith.constant 0 : i32
    return %c0_i32, %c0_i32_0 : i32, i32
  }
  func.func @transform_7(%arg0: i32) -> (i32, i32) {
    %c0_i32 = arith.constant 0 : i32
    %c0_i32_0 = arith.constant 0 : i32
    %c0_i32_1 = arith.constant 0 : i32
    return %c0_i32, %c0_i32_0 : i32, i32
  }
  func.func @transform_8(%arg0: i32) -> (i32, i32) {
    %c0_i32 = arith.constant 0 : i32
    %c0_i32_0 = arith.constant 0 : i32
    %c0_i32_1 = arith.constant 0 : i32
    return %c0_i32, %c0_i32_0 : i32, i32
  }
  func.func @transform_9(%arg0: i32) -> (i32, i32) {
    %c0_i32 = arith.constant 0 : i32
    %c0_i32_0 = arith.constant 0 : i32
    %c0_i32_1 = arith.constant 0 : i32
    return %c0_i32, %c0_i32_0 : i32, i32
  }
  func.func @transform_10(%arg0: i32) -> (i32, i32) {
    %c0_i32 = arith.constant 0 : i32
    %c0_i32_0 = arith.constant 0 : i32
    return %arg0, %c0_i32 : i32, i32
  }
}

</mosaic_0001>

<llo_original>
// kernel: tpu_custom_call.1
$region0: #{tpu_custom_call.1}
  #allocation0 [shape = 'u32[]', space=smem, size = 0x4, offset = 0x4, fixed_abs, tag = 'smem constant byte address 0x4 - core index']
  #allocation1 [shape = 'u32[72,128]{1,0:T(1,128)}', space=vmem, size = 0x9000, scoped, tag = 'internal scratch']
  %s0 = inlined_call_operand.vmem [shape: f32[512,32], index: 0, kind: input, shape index: {}]
  %s1 = inlined_call_operand.vmem [shape: f32[512,8], index: 1, kind: input, shape index: {}]
  %s2 = inlined_call_operand.vmem [shape: bf16[32,128], index: 2, kind: input, shape index: {}]
  %s3 = inlined_call_operand.vmem [shape: f32[1,128], index: 3, kind: input, shape index: {}]
  %s4 = inlined_call_operand.vmem [shape: bf16[128,128], index: 4, kind: input, shape index: {}]
  %s5 = inlined_call_operand.vmem [shape: f32[1,128], index: 5, kind: input, shape index: {}]
  %s6 = inlined_call_operand.vmem [shape: bf16[128,64], index: 6, kind: input, shape index: {}]
  %s7 = inlined_call_operand.vmem [shape: f32[1,64], index: 7, kind: input, shape index: {}]
  %s8 = inlined_call_operand.vmem [shape: bf16[64,16], index: 8, kind: input, shape index: {}]
  %s9 = inlined_call_operand.vmem [shape: f32[1,16], index: 9, kind: input, shape index: {}]
  %s10 = inlined_call_operand.hbm [shape: f32[512,128], index: 10, kind: output, shape index: {}]
  %s11 = sld [smem:[#allocation0]]
  $region50: #{tpu_custom_call.1} parent=0
    _
  %s13 = ssub.s32 1, %s11
  %s14 = scalar_select 0, %s13, %s11
  $region1: #{tpu_custom_call.1} parent=0
    #allocation2 [shape = 'u8[262144]{0}', space=vmem, size = 0x40000, scoped, tag = 'output window, operand 0, single buffered']
    #allocation3 [shape = 's32[1]{0}', space=sflag, size = 0x4, scoped, tag = 'scoped memory for tpu_custom_call.1']
    %15 = vsyncpa [#allocation3], 0
    // Predicated region
    $region2: #{tpu_custom_call.1} parent=1 // pred_check
      _
    $region3: #{tpu_custom_call.1} parent=1 // pred_check_branch
      %17 = sbr.rel (0) target = $region5
    $region4: #{tpu_custom_call.1} parent=1 // pred_region
      _
    $region5: #{tpu_custom_call.1} parent=1 // pred_fallthru
      _
    // Predicated region
    $region6: #{tpu_custom_call.1} parent=1 // pred_check
      _
    $region7: #{tpu_custom_call.1} parent=1 // pred_check_branch
      %19 = sbr.rel (0) target = $region9
    $region8: #{tpu_custom_call.1} parent=1 // pred_region
      _
    $region9: #{tpu_custom_call.1} parent=1 // pred_fallthru
      _
    // Predicated region
    $region10: #{tpu_custom_call.1} parent=1 // pred_check
      _
    $region11: #{tpu_custom_call.1} parent=1 // pred_check_branch
      %21 = sbr.rel (0) target = $region13
    $region12: #{tpu_custom_call.1} parent=1 // pred_region
      _
    $region13: #{tpu_custom_call.1} parent=1 // pred_fallthru
      _
    // Predicated region
    $region14: #{tpu_custom_call.1} parent=1 // pred_check
      _
    $region15: #{tpu_custom_call.1} parent=1 // pred_check_branch
      %23 = sbr.rel (0) target = $region17
    $region16: #{tpu_custom_call.1} parent=1 // pred_region
      _
    $region17: #{tpu_custom_call.1} parent=1 // pred_fallthru
      _
    // Predicated region
    $region18: #{tpu_custom_call.1} parent=1 // pred_check
      _
    $region19: #{tpu_custom_call.1} parent=1 // pred_check_branch
      %25 = sbr.rel (0) target = $region21
    $region20: #{tpu_custom_call.1} parent=1 // pred_region
      _
    $region21: #{tpu_custom_call.1} parent=1 // pred_fallthru
      _
    // Predicated region
    $region22: #{tpu_custom_call.1} parent=1 // pred_check
      _
    $region23: #{tpu_custom_call.1} parent=1 // pred_check_branch
      %27 = sbr.rel (0) target = $region25
    $region24: #{tpu_custom_call.1} parent=1 // pred_region
      _
    $region25: #{tpu_custom_call.1} parent=1 // pred_fallthru
      _
    // Predicated region
    $region26: #{tpu_custom_call.1} parent=1 // pred_check
      _
    $region27: #{tpu_custom_call.1} parent=1 // pred_check_branch
      %29 = sbr.rel (0) target = $region29
    $region28: #{tpu_custom_call.1} parent=1 // pred_region
      _
    $region29: #{tpu_custom_call.1} parent=1 // pred_fallthru
      _
    // Predicated region
    $region30: #{tpu_custom_call.1} parent=1 // pred_check
      _
    $region31: #{tpu_custom_call.1} parent=1 // pred_check_branch
      %31 = sbr.rel (0) target = $region33
    $region32: #{tpu_custom_call.1} parent=1 // pred_region
      _
    $region33: #{tpu_custom_call.1} parent=1 // pred_fallthru
      _
    // Predicated region
    $region34: #{tpu_custom_call.1} parent=1 // pred_check
      _
    $region35: #{tpu_custom_call.1} parent=1 // pred_check_branch
      %33 = sbr.rel (0) target = $region37
    $region36: #{tpu_custom_call.1} parent=1 // pred_region
      _
    $region37: #{tpu_custom_call.1} parent=1 // pred_fallthru
      _
    // Predicated region
    $region38: #{tpu_custom_call.1} parent=1 // pred_check
      _
    $region39: #{tpu_custom_call.1} parent=1 // pred_check_branch
      %35 = sbr.rel (0) target = $region41
    $region40: #{tpu_custom_call.1} parent=1 // pred_region
      _
    $region41: #{tpu_custom_call.1} parent=1 // pred_fallthru
      _
    %v37 = vld [vmem:[%s0] sm:$0xff]
    %v38 = vld [vmem:[%s0 + $0x8] sm:$0xff]
    %v39 = vld [vmem:[%s0 + $0x10] sm:$0xff]
    %v40 = vld [vmem:[%s0 + $0x18] sm:$0xff]
    %v41 = vld [vmem:[%s0 + $0x20] sm:$0xff]
    %v42 = vld [vmem:[%s0 + $0x28] sm:$0xff]
    %v43 = vld [vmem:[%s0 + $0x30] sm:$0xff]
    %v44 = vld [vmem:[%s0 + $0x38] sm:$0xff]
    %v45 = vld [vmem:[%s0 + $0x40] sm:$0xff]
    %v46 = vld [vmem:[%s0 + $0x48] sm:$0xff]
    %v47 = vld [vmem:[%s0 + $0x50] sm:$0xff]
    %v48 = vld [vmem:[%s0 + $0x58] sm:$0xff]
    %v49 = vld [vmem:[%s0 + $0x60] sm:$0xff]
    %v50 = vld [vmem:[%s0 + $0x68] sm:$0xff]
    %v51 = vld [vmem:[%s0 + $0x70] sm:$0xff]
    %v52 = vld [vmem:[%s0 + $0x78] sm:$0xff]
    %v53 = vld [vmem:[%s0 + $0x80] sm:$0xff]
    %v54 = vld [vmem:[%s0 + $0x88] sm:$0xff]
    %v55 = vld [vmem:[%s0 + $0x90] sm:$0xff]
    %v56 = vld [vmem:[%s0 + $0x98] sm:$0xff]
    %v57 = vld [vmem:[%s0 + $0xa0] sm:$0xff]
    %v58 = vld [vmem:[%s0 + $0xa8] sm:$0xff]
    %v59 = vld [vmem:[%s0 + $0xb0] sm:$0xff]
    %v60 = vld [vmem:[%s0 + $0xb8] sm:$0xff]
    %v61 = vld [vmem:[%s0 + $0xc0] sm:$0xff]
    %v62 = vld [vmem:[%s0 + $0xc8] sm:$0xff]
    %v63 = vld [vmem:[%s0 + $0xd0] sm:$0xff]
    %v64 = vld [vmem:[%s0 + $0xd8] sm:$0xff]
    %v65 = vld [vmem:[%s0 + $0xe0] sm:$0xff]
    %v66 = vld [vmem:[%s0 + $0xe8] sm:$0xff]
    %v67 = vld [vmem:[%s0 + $0xf0] sm:$0xff]
    %v68 = vld [vmem:[%s0 + $0xf8] sm:$0xff]
    %v69 = vld [vmem:[%s0 + $0x100] sm:$0xff]
    %v70 = vld [vmem:[%s0 + $0x108] sm:$0xff]
    %v71 = vld [vmem:[%s0 + $0x110] sm:$0xff]
    %v72 = vld [vmem:[%s0 + $0x118] sm:$0xff]
    %v73 = vld [vmem:[%s0 + $0x120] sm:$0xff]
    %v74 = vld [vmem:[%s0 + $0x128] sm:$0xff]
    %v75 = vld [vmem:[%s0 + $0x130] sm:$0xff]
    %v76 = vld [vmem:[%s0 + $0x138] sm:$0xff]
    %v77 = vld [vmem:[%s0 + $0x140] sm:$0xff]
    %v78 = vld [vmem:[%s0 + $0x148] sm:$0xff]
    %v79 = vld [vmem:[%s0 + $0x150] sm:$0xff]
    %v80 = vld [vmem:[%s0 + $0x158] sm:$0xff]
    %v81 = vld [vmem:[%s0 + $0x160] sm:$0xff]
    %v82 = vld [vmem:[%s0 + $0x168] sm:$0xff]
    %v83 = vld [vmem:[%s0 + $0x170] sm:$0xff]
    %v84 = vld [vmem:[%s0 + $0x178] sm:$0xff]
    %v85 = vld [vmem:[%s0 + $0x180] sm:$0xff]
    %v86 = vld [vmem:[%s0 + $0x188] sm:$0xff]
    %v87 = vld [vmem:[%s0 + $0x190] sm:$0xff]
    %v88 = vld [vmem:[%s0 + $0x198] sm:$0xff]
    %v89 = vld [vmem:[%s0 + $0x1a0] sm:$0xff]
    %v90 = vld [vmem:[%s0 + $0x1a8] sm:$0xff]
    %v91 = vld [vmem:[%s0 + $0x1b0] sm:$0xff]
    %v92 = vld [vmem:[%s0 + $0x1b8] sm:$0xff]
    %v93 = vld [vmem:[%s0 + $0x1c0] sm:$0xff]
    %v94 = vld [vmem:[%s0 + $0x1c8] sm:$0xff]
    %v95 = vld [vmem:[%s0 + $0x1d0] sm:$0xff]
    %v96 = vld [vmem:[%s0 + $0x1d8] sm:$0xff]
    %v97 = vld [vmem:[%s0 + $0x1e0] sm:$0xff]
    %v98 = vld [vmem:[%s0 + $0x1e8] sm:$0xff]
    %v99 = vld [vmem:[%s0 + $0x1f0] sm:$0xff]
    %v100 = vld [vmem:[%s0 + $0x1f8] sm:$0xff]
    %v101 = vpack.c.bf16 %v38, %v37
    %v102 = vpack.c.bf16 %v40, %v39
    %v103 = vpack.c.bf16 %v42, %v41
    %v104 = vpack.c.bf16 %v44, %v43
    %v105 = vpack.c.bf16 %v46, %v45
    %v106 = vpack.c.bf16 %v48, %v47
    %v107 = vpack.c.bf16 %v50, %v49
    %v108 = vpack.c.bf16 %v52, %v51
    %v109 = vpack.c.bf16 %v54, %v53
    %v110 = vpack.c.bf16 %v56, %v55
    %v111 = vpack.c.bf16 %v58, %v57
    %v112 = vpack.c.bf16 %v60, %v59
    %v113 = vpack.c.bf16 %v62, %v61
    %v114 = vpack.c.bf16 %v64, %v63
    %v115 = vpack.c.bf16 %v66, %v65
    %v116 = vpack.c.bf16 %v68, %v67
    %v117 = vpack.c.bf16 %v70, %v69
    %v118 = vpack.c.bf16 %v72, %v71
    %v119 = vpack.c.bf16 %v74, %v73
    %v120 = vpack.c.bf16 %v76, %v75
    %v121 = vpack.c.bf16 %v78, %v77
    %v122 = vpack.c.bf16 %v80, %v79
    %v123 = vpack.c.bf16 %v82, %v81
    %v124 = vpack.c.bf16 %v84, %v83
    %v125 = vpack.c.bf16 %v86, %v85
    %v126 = vpack.c.bf16 %v88, %v87
    %v127 = vpack.c.bf16 %v90, %v89
    %v128 = vpack.c.bf16 %v92, %v91
    %v129 = vpack.c.bf16 %v94, %v93
    %v130 = vpack.c.bf16 %v96, %v95
    %v131 = vpack.c.bf16 %v98, %v97
    %v132 = vpack.c.bf16 %v100, %v99
    %v133 = vld [vmem:[%s2] sm:$0xf]
    %v134 = vld [vmem:[%s2 + $0x4] sm:$0xf]
    %v135 = vld [vmem:[%s2 + $0x8] sm:$0xf]
    %v136 = vld [vmem:[%s2 + $0xc] sm:$0xf]
    %v137 = vld [vmem:[%s3] sm:$0x1]
    %v139 = vperm.slane %v137, 0
    %v145 = vunpack.c.l.b16 %v133
    %v146 = vunpack.c.l.b16 %v134
    %v147 = vunpack.c.l.b16 %v135
    %v148 = vunpack.c.l.b16 %v136
    %v149 = vpack.c.b16 %v146, %v145
    %v150 = vpack.c.b16 %v148, %v147
    %vm153 = vcmask 261120
    %v155 = vsel %vm153, %v101, 0
    %v158 = vsel %vm153, %v102, 0
    %v161 = vsel %vm153, %v103, 0
    %v164 = vsel %vm153, %v104, 0
    %v167 = vsel %vm153, %v105, 0
    %v170 = vsel %vm153, %v106, 0
    %v173 = vsel %vm153, %v107, 0
    %v176 = vsel %vm153, %v108, 0
    %v179 = vsel %vm153, %v109, 0
    %v182 = vsel %vm153, %v110, 0
    %v185 = vsel %vm153, %v111, 0
    %v188 = vsel %vm153, %v112, 0
    %v191 = vsel %vm153, %v113, 0
    %v194 = vsel %vm153, %v114, 0
    %v197 = vsel %vm153, %v115, 0
    %v200 = vsel %vm153, %v116, 0
    %v203 = vsel %vm153, %v117, 0
    %v206 = vsel %vm153, %v118, 0
    %v209 = vsel %vm153, %v119, 0
    %v212 = vsel %vm153, %v120, 0
    %v215 = vsel %vm153, %v121, 0
    %v218 = vsel %vm153, %v122, 0
    %v221 = vsel %vm153, %v123, 0
    %v224 = vsel %vm153, %v124, 0
    %v227 = vsel %vm153, %v125, 0
    %v230 = vsel %vm153, %v126, 0
    %v233 = vsel %vm153, %v127, 0
    %v236 = vsel %vm153, %v128, 0
    %v239 = vsel %vm153, %v129, 0
    %v242 = vsel %vm153, %v130, 0
    %v245 = vsel %vm153, %v131, 0
    %v248 = vsel %vm153, %v132, 0
    %250 = vmatpush.bf16.msra.mxu0 0
    %251 = vmatpush.bf16.msra.mxu0 0
    %252 = vmatpush.bf16.msra.mxu0 0
    %253 = vmatpush.bf16.msra.mxu0 0
    %254 = vmatpush.bf16.msra.mxu0 0
    %255 = vmatpush.bf16.msra.mxu0 0
    %256 = vmatpush.bf16.msra.mxu0 %v150
    %257 = vmatpush.bf16.msra.mxu0 %v149
    %258 = vmatmul.bf16.gmra.mxu0 %v155
    %v259 = vpop.f32.mrf.mxu0
    %v260 = vadd.f32 %v139, %v259
    %v261 = vpop.f32.mrf.mxu0
    %v262 = vadd.f32 %v139, %v261
    %263 = vmatmul.bf16.gmra.mxu0 %v158
    %v264 = vpop.f32.mrf.mxu0
    %v265 = vadd.f32 %v139, %v264
    %v266 = vpop.f32.mrf.mxu0
    %v267 = vadd.f32 %v139, %v266
    %268 = vmatmul.bf16.gmra.mxu0 %v161
    %v269 = vpop.f32.mrf.mxu0
    %v270 = vadd.f32 %v139, %v269
    %v271 = vpop.f32.mrf.mxu0
    %v272 = vadd.f32 %v139, %v271
    %273 = vmatmul.bf16.gmra.mxu0 %v164
    %v274 = vpop.f32.mrf.mxu0
    %v275 = vadd.f32 %v139, %v274
    %v276 = vpop.f32.mrf.mxu0
    %v277 = vadd.f32 %v139, %v276
    %278 = vmatmul.bf16.gmra.mxu0 %v167
    %v279 = vpop.f32.mrf.mxu0
    %v280 = vadd.f32 %v139, %v279
    %v281 = vpop.f32.mrf.mxu0
    %v282 = vadd.f32 %v139, %v281
    %283 = vmatmul.bf16.gmra.mxu0 %v170
    %v284 = vpop.f32.mrf.mxu0
    %v285 = vadd.f32 %v139, %v284
    %v286 = vpop.f32.mrf.mxu0
    %v287 = vadd.f32 %v139, %v286
    %288 = vmatmul.bf16.gmra.mxu0 %v173
    %v289 = vpop.f32.mrf.mxu0
    %v290 = vadd.f32 %v139, %v289
    %v291 = vpop.f32.mrf.mxu0
    %v292 = vadd.f32 %v139, %v291
    %293 = vmatmul.bf16.gmra.mxu0 %v176
    %v294 = vpop.f32.mrf.mxu0
    %v295 = vadd.f32 %v139, %v294
    %v296 = vpop.f32.mrf.mxu0
    %v297 = vadd.f32 %v139, %v296
    %298 = vmatmul.bf16.gmra.mxu0 %v179
    %v299 = vpop.f32.mrf.mxu0
    %v300 = vadd.f32 %v139, %v299
    %v301 = vpop.f32.mrf.mxu0
    %v302 = vadd.f32 %v139, %v301
    %303 = vmatmul.bf16.gmra.mxu0 %v182
    %v304 = vpop.f32.mrf.mxu0
    %v305 = vadd.f32 %v139, %v304
    %v306 = vpop.f32.mrf.mxu0
    %v307 = vadd.f32 %v139, %v306
    %308 = vmatmul.bf16.gmra.mxu0 %v185
    %v309 = vpop.f32.mrf.mxu0
    %v310 = vadd.f32 %v139, %v309
    %v311 = vpop.f32.mrf.mxu0
    %v312 = vadd.f32 %v139, %v311
    %313 = vmatmul.bf16.gmra.mxu0 %v188
    %v314 = vpop.f32.mrf.mxu0
    %v315 = vadd.f32 %v139, %v314
    %v316 = vpop.f32.mrf.mxu0
    %v317 = vadd.f32 %v139, %v316
    %318 = vmatmul.bf16.gmra.mxu0 %v191
    %v319 = vpop.f32.mrf.mxu0
    %v320 = vadd.f32 %v139, %v319
    %v321 = vpop.f32.mrf.mxu0
    %v322 = vadd.f32 %v139, %v321
    %323 = vmatmul.bf16.gmra.mxu0 %v194
    %v324 = vpop.f32.mrf.mxu0
    %v325 = vadd.f32 %v139, %v324
    %v326 = vpop.f32.mrf.mxu0
    %v327 = vadd.f32 %v139, %v326
    %328 = vmatmul.bf16.gmra.mxu0 %v197
    %v329 = vpop.f32.mrf.mxu0
    %v330 = vadd.f32 %v139, %v329
    %v331 = vpop.f32.mrf.mxu0
    %v332 = vadd.f32 %v139, %v331
    %333 = vmatmul.bf16.gmra.mxu0 %v200
    %v334 = vpop.f32.mrf.mxu0
    %v335 = vadd.f32 %v139, %v334
    %v336 = vpop.f32.mrf.mxu0
    %v337 = vadd.f32 %v139, %v336
    %338 = vmatmul.bf16.gmra.mxu0 %v203
    %v339 = vpop.f32.mrf.mxu0
    %v340 = vadd.f32 %v139, %v339
    %v341 = vpop.f32.mrf.mxu0
    %v342 = vadd.f32 %v139, %v341
    %343 = vmatmul.bf16.gmra.mxu0 %v206
    %v344 = vpop.f32.mrf.mxu0
    %v345 = vadd.f32 %v139, %v344
    %v346 = vpop.f32.mrf.mxu0
    %v347 = vadd.f32 %v139, %v346
    %348 = vmatmul.bf16.gmra.mxu0 %v209
    %v349 = vpop.f32.mrf.mxu0
    %v350 = vadd.f32 %v139, %v349
    %v351 = vpop.f32.mrf.mxu0
    %v352 = vadd.f32 %v139, %v351
    %353 = vmatmul.bf16.gmra.mxu0 %v212
    %v354 = vpop.f32.mrf.mxu0
    %v355 = vadd.f32 %v139, %v354
    %v356 = vpop.f32.mrf.mxu0
    %v357 = vadd.f32 %v139, %v356
    %358 = vmatmul.bf16.gmra.mxu0 %v215
    %v359 = vpop.f32.mrf.mxu0
    %v360 = vadd.f32 %v139, %v359
    %v361 = vpop.f32.mrf.mxu0
    %v362 = vadd.f32 %v139, %v361
    %363 = vmatmul.bf16.gmra.mxu0 %v218
    %v364 = vpop.f32.mrf.mxu0
    %v365 = vadd.f32 %v139, %v364
    %v366 = vpop.f32.mrf.mxu0
    %v367 = vadd.f32 %v139, %v366
    %368 = vmatmul.bf16.gmra.mxu0 %v221
    %v369 = vpop.f32.mrf.mxu0
    %v370 = vadd.f32 %v139, %v369
    %v371 = vpop.f32.mrf.mxu0
    %v372 = vadd.f32 %v139, %v371
    %373 = vmatmul.bf16.gmra.mxu0 %v224
    %v374 = vpop.f32.mrf.mxu0
    %v375 = vadd.f32 %v139, %v374
    %v376 = vpop.f32.mrf.mxu0
    %v377 = vadd.f32 %v139, %v376
    %378 = vmatmul.bf16.gmra.mxu0 %v227
    %v379 = vpop.f32.mrf.mxu0
    %v380 = vadd.f32 %v139, %v379
    %v381 = vpop.f32.mrf.mxu0
    %v382 = vadd.f32 %v139, %v381
    %383 = vmatmul.bf16.gmra.mxu0 %v230
    %v384 = vpop.f32.mrf.mxu0
    %v385 = vadd.f32 %v139, %v384
    %v386 = vpop.f32.mrf.mxu0
    %v387 = vadd.f32 %v139, %v386
    %388 = vmatmul.bf16.gmra.mxu0 %v233
    %v389 = vpop.f32.mrf.mxu0
    %v390 = vadd.f32 %v139, %v389
    %v391 = vpop.f32.mrf.mxu0
    %v392 = vadd.f32 %v139, %v391
    %393 = vmatmul.bf16.gmra.mxu0 %v236
    %v394 = vpop.f32.mrf.mxu0
    %v395 = vadd.f32 %v139, %v394
    %v396 = vpop.f32.mrf.mxu0
    %v397 = vadd.f32 %v139, %v396
    %398 = vmatmul.bf16.gmra.mxu0 %v239
    %v399 = vpop.f32.mrf.mxu0
    %v400 = vadd.f32 %v139, %v399
    %v401 = vpop.f32.mrf.mxu0
    %v402 = vadd.f32 %v139, %v401
    %403 = vmatmul.bf16.gmra.mxu0 %v242
    %v404 = vpop.f32.mrf.mxu0
    %v405 = vadd.f32 %v139, %v404
    %v406 = vpop.f32.mrf.mxu0
    %v407 = vadd.f32 %v139, %v406
    %408 = vmatmul.bf16.gmra.mxu0 %v245
    %v409 = vpop.f32.mrf.mxu0
    %v410 = vadd.f32 %v139, %v409
    %v411 = vpop.f32.mrf.mxu0
    %v412 = vadd.f32 %v139, %v411
    %413 = vmatmul.bf16.gmra.mxu0 %v248
    %v414 = vpop.f32.mrf.mxu0
    %v415 = vadd.f32 %v139, %v414
    %v416 = vpop.f32.mrf.mxu0
    %v417 = vadd.f32 %v139, %v416
    %418 = vdwg.mxu0
    %v419 = vmax.f32 %v260, 0.0
    %v420 = vmax.f32 %v262, 0.0
    %v421 = vmax.f32 %v265, 0.0
    %v422 = vmax.f32 %v267, 0.0
    %v423 = vmax.f32 %v270, 0.0
    %v424 = vmax.f32 %v272, 0.0
    %v425 = vmax.f32 %v275, 0.0
    %v426 = vmax.f32 %v277, 0.0
    %v427 = vmax.f32 %v280, 0.0
    %v428 = vmax.f32 %v282, 0.0
    %v429 = vmax.f32 %v285, 0.0
    %v430 = vmax.f32 %v287, 0.0
    %v431 = vmax.f32 %v290, 0.0
    %v432 = vmax.f32 %v292, 0.0
    %v433 = vmax.f32 %v295, 0.0
    %v434 = vmax.f32 %v297, 0.0
    %v435 = vmax.f32 %v300, 0.0
    %v436 = vmax.f32 %v302, 0.0
    %v437 = vmax.f32 %v305, 0.0
    %v438 = vmax.f32 %v307, 0.0
    %v439 = vmax.f32 %v310, 0.0
    %v440 = vmax.f32 %v312, 0.0
    %v441 = vmax.f32 %v315, 0.0
    %v442 = vmax.f32 %v317, 0.0
    %v443 = vmax.f32 %v320, 0.0
    %v444 = vmax.f32 %v322, 0.0
    %v445 = vmax.f32 %v325, 0.0
    %v446 = vmax.f32 %v327, 0.0
    %v447 = vmax.f32 %v330, 0.0
    %v448 = vmax.f32 %v332, 0.0
    %v449 = vmax.f32 %v335, 0.0
    %v450 = vmax.f32 %v337, 0.0
    %v451 = vmax.f32 %v340, 0.0
    %v452 = vmax.f32 %v342, 0.0
    %v453 = vmax.f32 %v345, 0.0
    %v454 = vmax.f32 %v347, 0.0
    %v455 = vmax.f32 %v350, 0.0
    %v456 = vmax.f32 %v352, 0.0
    %v457 = vmax.f32 %v355, 0.0
    %v458 = vmax.f32 %v357, 0.0
    %v459 = vmax.f32 %v360, 0.0
    %v460 = vmax.f32 %v362, 0.0
    %v461 = vmax.f32 %v365, 0.0
    %v462 = vmax.f32 %v367, 0.0
    %v463 = vmax.f32 %v370, 0.0
    %v464 = vmax.f32 %v372, 0.0
    %v465 = vmax.f32 %v375, 0.0
    %v466 = vmax.f32 %v377, 0.0
    %v467 = vmax.f32 %v380, 0.0
    %v468 = vmax.f32 %v382, 0.0
    %v469 = vmax.f32 %v385, 0.0
    %v470 = vmax.f32 %v387, 0.0
    %v471 = vmax.f32 %v390, 0.0
    %v472 = vmax.f32 %v392, 0.0
    %v473 = vmax.f32 %v395, 0.0
    %v474 = vmax.f32 %v397, 0.0
    %v475 = vmax.f32 %v400, 0.0
    %v476 = vmax.f32 %v402, 0.0
    %v477 = vmax.f32 %v405, 0.0
    %v478 = vmax.f32 %v407, 0.0
    %v479 = vmax.f32 %v410, 0.0
    %v480 = vmax.f32 %v412, 0.0
    %v481 = vmax.f32 %v415, 0.0
    %v482 = vmax.f32 %v417, 0.0
    %v483 = vpack.c.bf16 %v420, %v419
    %v484 = vpack.c.bf16 %v422, %v421
    %v485 = vpack.c.bf16 %v424, %v423
    %v486 = vpack.c.bf16 %v426, %v425
    %v487 = vpack.c.bf16 %v428, %v427
    %v488 = vpack.c.bf16 %v430, %v429
    %v489 = vpack.c.bf16 %v432, %v431
    %v490 = vpack.c.bf16 %v434, %v433
    %v491 = vpack.c.bf16 %v436, %v435
    %v492 = vpack.c.bf16 %v438, %v437
    %v493 = vpack.c.bf16 %v440, %v439
    %v494 = vpack.c.bf16 %v442, %v441
    %v495 = vpack.c.bf16 %v444, %v443
    %v496 = vpack.c.bf16 %v446, %v445
    %v497 = vpack.c.bf16 %v448, %v447
    %v498 = vpack.c.bf16 %v450, %v449
    %v499 = vpack.c.bf16 %v452, %v451
    %v500 = vpack.c.bf16 %v454, %v453
    %v501 = vpack.c.bf16 %v456, %v455
    %v502 = vpack.c.bf16 %v458, %v457
    %v503 = vpack.c.bf16 %v460, %v459
    %v504 = vpack.c.bf16 %v462, %v461
    %v505 = vpack.c.bf16 %v464, %v463
    %v506 = vpack.c.bf16 %v466, %v465
    %v507 = vpack.c.bf16 %v468, %v467
    %v508 = vpack.c.bf16 %v470, %v469
    %v509 = vpack.c.bf16 %v472, %v471
    %v510 = vpack.c.bf16 %v474, %v473
    %v511 = vpack.c.bf16 %v476, %v475
    %v512 = vpack.c.bf16 %v478, %v477
    %v513 = vpack.c.bf16 %v480, %v479
    %v514 = vpack.c.bf16 %v482, %v481
    %v515 = vld [vmem:[%s4] sm:$0xf]
    %v516 = vld [vmem:[%s4 + $0x4] sm:$0xf]
    %v517 = vld [vmem:[%s4 + $0x8] sm:$0xf]
    %v518 = vld [vmem:[%s4 + $0xc] sm:$0xf]
    %v519 = vld [vmem:[%s4 + $0x10] sm:$0xf]
    %v520 = vld [vmem:[%s4 + $0x14] sm:$0xf]
    %v521 = vld [vmem:[%s4 + $0x18] sm:$0xf]
    %v522 = vld [vmem:[%s4 + $0x1c] sm:$0xf]
    %v523 = vld [vmem:[%s4 + $0x20] sm:$0xf]
    %v524 = vld [vmem:[%s4 + $0x24] sm:$0xf]
    %v525 = vld [vmem:[%s4 + $0x28] sm:$0xf]
    %v526 = vld [vmem:[%s4 + $0x2c] sm:$0xf]
    %v527 = vld [vmem:[%s4 + $0x30] sm:$0xf]
    %v528 = vld [vmem:[%s4 + $0x34] sm:$0xf]
    %v529 = vld [vmem:[%s4 + $0x38] sm:$0xf]
    %v530 = vld [vmem:[%s4 + $0x3c] sm:$0xf]
    %v531 = vld [vmem:[%s5] sm:$0x1]
    %v533 = vperm.slane %v531, 0
    %v551 = vunpack.c.l.b16 %v515
    %v552 = vunpack.c.l.b16 %v516
    %v553 = vunpack.c.l.b16 %v517
    %v554 = vunpack.c.l.b16 %v518
    %v555 = vunpack.c.l.b16 %v519
    %v556 = vunpack.c.l.b16 %v520
    %v557 = vunpack.c.l.b16 %v521
    %v558 = vunpack.c.l.b16 %v522
    %v559 = vunpack.c.l.b16 %v523
    %v560 = vunpack.c.l.b16 %v524
    %v561 = vunpack.c.l.b16 %v525
    %v562 = vunpack.c.l.b16 %v526
    %v563 = vunpack.c.l.b16 %v527
    %v564 = vunpack.c.l.b16 %v528
    %v565 = vunpack.c.l.b16 %v529
    %v566 = vunpack.c.l.b16 %v530
    %v567 = vpack.c.b16 %v552, %v551
    %v568 = vpack.c.b16 %v554, %v553
    %v569 = vpack.c.b16 %v556, %v555
    %v570 = vpack.c.b16 %v558, %v557
    %v571 = vpack.c.b16 %v560, %v559
    %v572 = vpack.c.b16 %v562, %v561
    %v573 = vpack.c.b16 %v564, %v563
    %v574 = vpack.c.b16 %v566, %v565
    %583 = vmatpush.bf16.msra.mxu0 %v574
    %584 = vmatpush.bf16.msra.mxu0 %v573
    %585 = vmatpush.bf16.msra.mxu0 %v572
    %586 = vmatpush.bf16.msra.mxu0 %v571
    %587 = vmatpush.bf16.msra.mxu0 %v570
    %588 = vmatpush.bf16.msra.mxu0 %v569
    %589 = vmatpush.bf16.msra.mxu0 %v568
    %590 = vmatpush.bf16.msra.mxu0 %v567
    %591 = vmatmul.bf16.gmra.mxu0 %v483
    %v592 = vpop.f32.mrf.mxu0
    %v593 = vadd.f32 %v533, %v592
    %v594 = vpop.f32.mrf.mxu0
    %v595 = vadd.f32 %v533, %v594
    %596 = vmatmul.bf16.gmra.mxu0 %v484
    %v597 = vpop.f32.mrf.mxu0
    %v598 = vadd.f32 %v533, %v597
    %v599 = vpop.f32.mrf.mxu0
    %v600 = vadd.f32 %v533, %v599
    %601 = vmatmul.bf16.gmra.mxu0 %v485
    %v602 = vpop.f32.mrf.mxu0
    %v603 = vadd.f32 %v533, %v602
    %v604 = vpop.f32.mrf.mxu0
    %v605 = vadd.f32 %v533, %v604
    %606 = vmatmul.bf16.gmra.mxu0 %v486
    %v607 = vpop.f32.mrf.mxu0
    %v608 = vadd.f32 %v533, %v607
    %v609 = vpop.f32.mrf.mxu0
    %v610 = vadd.f32 %v533, %v609
    %611 = vmatmul.bf16.gmra.mxu0 %v487
    %v612 = vpop.f32.mrf.mxu0
    %v613 = vadd.f32 %v533, %v612
    %v614 = vpop.f32.mrf.mxu0
    %v615 = vadd.f32 %v533, %v614
    %616 = vmatmul.bf16.gmra.mxu0 %v488
    %v617 = vpop.f32.mrf.mxu0
    %v618 = vadd.f32 %v533, %v617
    %v619 = vpop.f32.mrf.mxu0
    %v620 = vadd.f32 %v533, %v619
    %621 = vmatmul.bf16.gmra.mxu0 %v489
    %v622 = vpop.f32.mrf.mxu0
    %v623 = vadd.f32 %v533, %v622
    %v624 = vpop.f32.mrf.mxu0
    %v625 = vadd.f32 %v533, %v624
    %626 = vmatmul.bf16.gmra.mxu0 %v490
    %v627 = vpop.f32.mrf.mxu0
    %v628 = vadd.f32 %v533, %v627
    %v629 = vpop.f32.mrf.mxu0
    %v630 = vadd.f32 %v533, %v629
    %631 = vmatmul.bf16.gmra.mxu0 %v491
    %v632 = vpop.f32.mrf.mxu0
    %v633 = vadd.f32 %v533, %v632
    %v634 = vpop.f32.mrf.mxu0
    %v635 = vadd.f32 %v533, %v634
    %636 = vmatmul.bf16.gmra.mxu0 %v492
    %v637 = vpop.f32.mrf.mxu0
    %v638 = vadd.f32 %v533, %v637
    %v639 = vpop.f32.mrf.mxu0
    %v640 = vadd.f32 %v533, %v639
    %641 = vmatmul.bf16.gmra.mxu0 %v493
    %v642 = vpop.f32.mrf.mxu0
    %v643 = vadd.f32 %v533, %v642
    %v644 = vpop.f32.mrf.mxu0
    %v645 = vadd.f32 %v533, %v644
    %646 = vmatmul.bf16.gmra.mxu0 %v494
    %v647 = vpop.f32.mrf.mxu0
    %v648 = vadd.f32 %v533, %v647
    %v649 = vpop.f32.mrf.mxu0
    %v650 = vadd.f32 %v533, %v649
    %651 = vmatmul.bf16.gmra.mxu0 %v495
    %v652 = vpop.f32.mrf.mxu0
    %v653 = vadd.f32 %v533, %v652
    %v654 = vpop.f32.mrf.mxu0
    %v655 = vadd.f32 %v533, %v654
    %656 = vmatmul.bf16.gmra.mxu0 %v496
    %v657 = vpop.f32.mrf.mxu0
    %v658 = vadd.f32 %v533, %v657
    %v659 = vpop.f32.mrf.mxu0
    %v660 = vadd.f32 %v533, %v659
    %661 = vmatmul.bf16.gmra.mxu0 %v497
    %v662 = vpop.f32.mrf.mxu0
    %v663 = vadd.f32 %v533, %v662
    %v664 = vpop.f32.mrf.mxu0
    %v665 = vadd.f32 %v533, %v664
    %666 = vmatmul.bf16.gmra.mxu0 %v498
    %v667 = vpop.f32.mrf.mxu0
    %v668 = vadd.f32 %v533, %v667
    %v669 = vpop.f32.mrf.mxu0
    %v670 = vadd.f32 %v533, %v669
    %671 = vmatmul.bf16.gmra.mxu0 %v499
    %v672 = vpop.f32.mrf.mxu0
    %v673 = vadd.f32 %v533, %v672
    %v674 = vpop.f32.mrf.mxu0
    %v675 = vadd.f32 %v533, %v674
    %676 = vmatmul.bf16.gmra.mxu0 %v500
    %v677 = vpop.f32.mrf.mxu0
    %v678 = vadd.f32 %v533, %v677
    %v679 = vpop.f32.mrf.mxu0
    %v680 = vadd.f32 %v533, %v679
    %681 = vmatmul.bf16.gmra.mxu0 %v501
    %v682 = vpop.f32.mrf.mxu0
    %v683 = vadd.f32 %v533, %v682
    %v684 = vpop.f32.mrf.mxu0
    %v685 = vadd.f32 %v533, %v684
    %686 = vmatmul.bf16.gmra.mxu0 %v502
    %v687 = vpop.f32.mrf.mxu0
    %v688 = vadd.f32 %v533, %v687
    %v689 = vpop.f32.mrf.mxu0
    %v690 = vadd.f32 %v533, %v689
    %691 = vmatmul.bf16.gmra.mxu0 %v503
    %v692 = vpop.f32.mrf.mxu0
    %v693 = vadd.f32 %v533, %v692
    %v694 = vpop.f32.mrf.mxu0
    %v695 = vadd.f32 %v533, %v694
    %696 = vmatmul.bf16.gmra.mxu0 %v504
    %v697 = vpop.f32.mrf.mxu0
    %v698 = vadd.f32 %v533, %v697
    %v699 = vpop.f32.mrf.mxu0
    %v700 = vadd.f32 %v533, %v699
    %701 = vmatmul.bf16.gmra.mxu0 %v505
    %v702 = vpop.f32.mrf.mxu0
    %v703 = vadd.f32 %v533, %v702
    %v704 = vpop.f32.mrf.mxu0
    %v705 = vadd.f32 %v533, %v704
    %706 = vmatmul.bf16.gmra.mxu0 %v506
    %v707 = vpop.f32.mrf.mxu0
    %v708 = vadd.f32 %v533, %v707
    %v709 = vpop.f32.mrf.mxu0
    %v710 = vadd.f32 %v533, %v709
    %711 = vmatmul.bf16.gmra.mxu0 %v507
    %v712 = vpop.f32.mrf.mxu0
    %v713 = vadd.f32 %v533, %v712
    %v714 = vpop.f32.mrf.mxu0
    %v715 = vadd.f32 %v533, %v714
    %716 = vmatmul.bf16.gmra.mxu0 %v508
    %v717 = vpop.f32.mrf.mxu0
    %v718 = vadd.f32 %v533, %v717
    %v719 = vpop.f32.mrf.mxu0
    %v720 = vadd.f32 %v533, %v719
    %721 = vmatmul.bf16.gmra.mxu0 %v509
    %v722 = vpop.f32.mrf.mxu0
    %v723 = vadd.f32 %v533, %v722
    %v724 = vpop.f32.mrf.mxu0
    %v725 = vadd.f32 %v533, %v724
    %726 = vmatmul.bf16.gmra.mxu0 %v510
    %v727 = vpop.f32.mrf.mxu0
    %v728 = vadd.f32 %v533, %v727
    %v729 = vpop.f32.mrf.mxu0
    %v730 = vadd.f32 %v533, %v729
    %731 = vmatmul.bf16.gmra.mxu0 %v511
    %v732 = vpop.f32.mrf.mxu0
    %v733 = vadd.f32 %v533, %v732
    %v734 = vpop.f32.mrf.mxu0
    %v735 = vadd.f32 %v533, %v734
    %736 = vmatmul.bf16.gmra.mxu0 %v512
    %v737 = vpop.f32.mrf.mxu0
    %v738 = vadd.f32 %v533, %v737
    %v739 = vpop.f32.mrf.mxu0
    %v740 = vadd.f32 %v533, %v739
    %741 = vmatmul.bf16.gmra.mxu0 %v513
    %v742 = vpop.f32.mrf.mxu0
    %v743 = vadd.f32 %v533, %v742
    %v744 = vpop.f32.mrf.mxu0
    %v745 = vadd.f32 %v533, %v744
    %746 = vmatmul.bf16.gmra.mxu0 %v514
    %v747 = vpop.f32.mrf.mxu0
    %v748 = vadd.f32 %v533, %v747
    %v749 = vpop.f32.mrf.mxu0
    %v750 = vadd.f32 %v533, %v749
    %751 = vdwg.mxu0
    %v752 = vmax.f32 %v593, 0.0
    %v753 = vmax.f32 %v595, 0.0
    %v754 = vmax.f32 %v598, 0.0
    %v755 = vmax.f32 %v600, 0.0
    %v756 = vmax.f32 %v603, 0.0
    %v757 = vmax.f32 %v605, 0.0
    %v758 = vmax.f32 %v608, 0.0
    %v759 = vmax.f32 %v610, 0.0
    %v760 = vmax.f32 %v613, 0.0
    %v761 = vmax.f32 %v615, 0.0
    %v762 = vmax.f32 %v618, 0.0
    %v763 = vmax.f32 %v620, 0.0
    %v764 = vmax.f32 %v623, 0.0
    %v765 = vmax.f32 %v625, 0.0
    %v766 = vmax.f32 %v628, 0.0
    %v767 = vmax.f32 %v630, 0.0
    %v768 = vmax.f32 %v633, 0.0
    %v769 = vmax.f32 %v635, 0.0
    %v770 = vmax.f32 %v638, 0.0
    %v771 = vmax.f32 %v640, 0.0
    %v772 = vmax.f32 %v643, 0.0
    %v773 = vmax.f32 %v645, 0.0
    %v774 = vmax.f32 %v648, 0.0
    %v775 = vmax.f32 %v650, 0.0
    %v776 = vmax.f32 %v653, 0.0
    %v777 = vmax.f32 %v655, 0.0
    %v778 = vmax.f32 %v658, 0.0
    %v779 = vmax.f32 %v660, 0.0
    %v780 = vmax.f32 %v663, 0.0
    %v781 = vmax.f32 %v665, 0.0
    %v782 = vmax.f32 %v668, 0.0
    %v783 = vmax.f32 %v670, 0.0
    %v784 = vmax.f32 %v673, 0.0
    %v785 = vmax.f32 %v675, 0.0
    %v786 = vmax.f32 %v678, 0.0
    %v787 = vmax.f32 %v680, 0.0
    %v788 = vmax.f32 %v683, 0.0
    %v789 = vmax.f32 %v685, 0.0
    %v790 = vmax.f32 %v688, 0.0
    %v791 = vmax.f32 %v690, 0.0
    %v792 = vmax.f32 %v693, 0.0
    %v793 = vmax.f32 %v695, 0.0
    %v794 = vmax.f32 %v698, 0.0
    %v795 = vmax.f32 %v700, 0.0
    %v796 = vmax.f32 %v703, 0.0
    %v797 = vmax.f32 %v705, 0.0
    %v798 = vmax.f32 %v708, 0.0
    %v799 = vmax.f32 %v710, 0.0
    %v800 = vmax.f32 %v713, 0.0
    %v801 = vmax.f32 %v715, 0.0
    %v802 = vmax.f32 %v718, 0.0
    %v803 = vmax.f32 %v720, 0.0
    %v804 = vmax.f32 %v723, 0.0
    %v805 = vmax.f32 %v725, 0.0
    %v806 = vmax.f32 %v728, 0.0
    %v807 = vmax.f32 %v730, 0.0
    %v808 = vmax.f32 %v733, 0.0
    %v809 = vmax.f32 %v735, 0.0
    %v810 = vmax.f32 %v738, 0.0
    %v811 = vmax.f32 %v740, 0.0
    %v812 = vmax.f32 %v743, 0.0
    %v813 = vmax.f32 %v745, 0.0
    %v814 = vmax.f32 %v748, 0.0
    %v815 = vmax.f32 %v750, 0.0
    %v816 = vpack.c.bf16 %v753, %v752
    %v817 = vpack.c.bf16 %v755, %v754
    %v818 = vpack.c.bf16 %v757, %v756
    %v819 = vpack.c.bf16 %v759, %v758
    %v820 = vpack.c.bf16 %v761, %v760
    %v821 = vpack.c.bf16 %v763, %v762
    %v822 = vpack.c.bf16 %v765, %v764
    %v823 = vpack.c.bf16 %v767, %v766
    %v824 = vpack.c.bf16 %v769, %v768
    %v825 = vpack.c.bf16 %v771, %v770
    %v826 = vpack.c.bf16 %v773, %v772
    %v827 = vpack.c.bf16 %v775, %v774
    %v828 = vpack.c.bf16 %v777, %v776
    %v829 = vpack.c.bf16 %v779, %v778
    %v830 = vpack.c.bf16 %v781, %v780
    %v831 = vpack.c.bf16 %v783, %v782
    %v832 = vpack.c.bf16 %v785, %v784
    %v833 = vpack.c.bf16 %v787, %v786
    %v834 = vpack.c.bf16 %v789, %v788
    %v835 = vpack.c.bf16 %v791, %v790
    %v836 = vpack.c.bf16 %v793, %v792
    %v837 = vpack.c.bf16 %v795, %v794
    %v838 = vpack.c.bf16 %v797, %v796
    %v839 = vpack.c.bf16 %v799, %v798
    %v840 = vpack.c.bf16 %v801, %v800
    %v841 = vpack.c.bf16 %v803, %v802
    %v842 = vpack.c.bf16 %v805, %v804
    %v843 = vpack.c.bf16 %v807, %v806
    %v844 = vpack.c.bf16 %v809, %v808
    %v845 = vpack.c.bf16 %v811, %v810
    %v846 = vpack.c.bf16 %v813, %v812
    %v847 = vpack.c.bf16 %v815, %v814
    %v848 = vld [vmem:[%s6] sm:$0xf]
    %v849 = vld [vmem:[%s6 + $0x4] sm:$0xf]
    %v850 = vld [vmem:[%s6 + $0x8] sm:$0xf]
    %v851 = vld [vmem:[%s6 + $0xc] sm:$0xf]
    %v852 = vld [vmem:[%s6 + $0x10] sm:$0xf]
    %v853 = vld [vmem:[%s6 + $0x14] sm:$0xf]
    %v854 = vld [vmem:[%s6 + $0x18] sm:$0xf]
    %v855 = vld [vmem:[%s6 + $0x1c] sm:$0xf]
    %v856 = vld [vmem:[%s6 + $0x20] sm:$0xf]
    %v857 = vld [vmem:[%s6 + $0x24] sm:$0xf]
    %v858 = vld [vmem:[%s6 + $0x28] sm:$0xf]
    %v859 = vld [vmem:[%s6 + $0x2c] sm:$0xf]
    %v860 = vld [vmem:[%s6 + $0x30] sm:$0xf]
    %v861 = vld [vmem:[%s6 + $0x34] sm:$0xf]
    %v862 = vld [vmem:[%s6 + $0x38] sm:$0xf]
    %v863 = vld [vmem:[%s6 + $0x3c] sm:$0xf]
    %v864 = vld [vmem:[%s7] sm:$0x1]
    %v866 = vperm.slane %v864, 0
    %v884 = vunpack.c.l.b16 %v848
    %v885 = vunpack.c.l.b16 %v849
    %v886 = vunpack.c.l.b16 %v850
    %v887 = vunpack.c.l.b16 %v851
    %v888 = vunpack.c.l.b16 %v852
    %v889 = vunpack.c.l.b16 %v853
    %v890 = vunpack.c.l.b16 %v854
    %v891 = vunpack.c.l.b16 %v855
    %v892 = vunpack.c.l.b16 %v856
    %v893 = vunpack.c.l.b16 %v857
    %v894 = vunpack.c.l.b16 %v858
    %v895 = vunpack.c.l.b16 %v859
    %v896 = vunpack.c.l.b16 %v860
    %v897 = vunpack.c.l.b16 %v861
    %v898 = vunpack.c.l.b16 %v862
    %v899 = vunpack.c.l.b16 %v863
    %v900 = vpack.c.b16 %v885, %v884
    %v901 = vpack.c.b16 %v887, %v886
    %v902 = vpack.c.b16 %v889, %v888
    %v903 = vpack.c.b16 %v891, %v890
    %v904 = vpack.c.b16 %v893, %v892
    %v905 = vpack.c.b16 %v895, %v894
    %v906 = vpack.c.b16 %v897, %v896
    %v907 = vpack.c.b16 %v899, %v898
    %916 = vmatpush.bf16.msra.mxu0 %v907
    %917 = vmatpush.bf16.msra.mxu0 %v906
    %918 = vmatpush.bf16.msra.mxu0 %v905
    %919 = vmatpush.bf16.msra.mxu0 %v904
    %920 = vmatpush.bf16.msra.mxu0 %v903
    %921 = vmatpush.bf16.msra.mxu0 %v902
    %922 = vmatpush.bf16.msra.mxu0 %v901
    %923 = vmatpush.bf16.msra.mxu0 %v900
    %924 = vmatmul.bf16.gmra.mxu0 %v816
    %v925 = vpop.f32.mrf.mxu0
    %v926 = vadd.f32 %v866, %v925
    %v927 = vpop.f32.mrf.mxu0
    %v928 = vadd.f32 %v866, %v927
    %929 = vmatmul.bf16.gmra.mxu0 %v817
    %v930 = vpop.f32.mrf.mxu0
    %v931 = vadd.f32 %v866, %v930
    %v932 = vpop.f32.mrf.mxu0
    %v933 = vadd.f32 %v866, %v932
    %934 = vmatmul.bf16.gmra.mxu0 %v818
    %v935 = vpop.f32.mrf.mxu0
    %v936 = vadd.f32 %v866, %v935
    %v937 = vpop.f32.mrf.mxu0
    %v938 = vadd.f32 %v866, %v937
    %939 = vmatmul.bf16.gmra.mxu0 %v819
    %v940 = vpop.f32.mrf.mxu0
    %v941 = vadd.f32 %v866, %v940
    %v942 = vpop.f32.mrf.mxu0
    %v943 = vadd.f32 %v866, %v942
    %944 = vmatmul.bf16.gmra.mxu0 %v820
    %v945 = vpop.f32.mrf.mxu0
    %v946 = vadd.f32 %v866, %v945
    %v947 = vpop.f32.mrf.mxu0
    %v948 = vadd.f32 %v866, %v947
    %949 = vmatmul.bf16.gmra.mxu0 %v821
    %v950 = vpop.f32.mrf.mxu0
    %v951 = vadd.f32 %v866, %v950
    %v952 = vpop.f32.mrf.mxu0
    %v953 = vadd.f32 %v866, %v952
    %954 = vmatmul.bf16.gmra.mxu0 %v822
    %v955 = vpop.f32.mrf.mxu0
    %v956 = vadd.f32 %v866, %v955
    %v957 = vpop.f32.mrf.mxu0
    %v958 = vadd.f32 %v866, %v957
    %959 = vmatmul.bf16.gmra.mxu0 %v823
    %v960 = vpop.f32.mrf.mxu0
    %v961 = vadd.f32 %v866, %v960
    %v962 = vpop.f32.mrf.mxu0
    %v963 = vadd.f32 %v866, %v962
    %964 = vmatmul.bf16.gmra.mxu0 %v824
    %v965 = vpop.f32.mrf.mxu0
    %v966 = vadd.f32 %v866, %v965
    %v967 = vpop.f32.mrf.mxu0
    %v968 = vadd.f32 %v866, %v967
    %969 = vmatmul.bf16.gmra.mxu0 %v825
    %v970 = vpop.f32.mrf.mxu0
    %v971 = vadd.f32 %v866, %v970
    %v972 = vpop.f32.mrf.mxu0
    %v973 = vadd.f32 %v866, %v972
    %974 = vmatmul.bf16.gmra.mxu0 %v826
    %v975 = vpop.f32.mrf.mxu0
    %v976 = vadd.f32 %v866, %v975
    %v977 = vpop.f32.mrf.mxu0
    %v978 = vadd.f32 %v866, %v977
    %979 = vmatmul.bf16.gmra.mxu0 %v827
    %v980 = vpop.f32.mrf.mxu0
    %v981 = vadd.f32 %v866, %v980
    %v982 = vpop.f32.mrf.mxu0
    %v983 = vadd.f32 %v866, %v982
    %984 = vmatmul.bf16.gmra.mxu0 %v828
    %v985 = vpop.f32.mrf.mxu0
    %v986 = vadd.f32 %v866, %v985
    %v987 = vpop.f32.mrf.mxu0
    %v988 = vadd.f32 %v866, %v987
    %989 = vmatmul.bf16.gmra.mxu0 %v829
    %v990 = vpop.f32.mrf.mxu0
    %v991 = vadd.f32 %v866, %v990
    %v992 = vpop.f32.mrf.mxu0
    %v993 = vadd.f32 %v866, %v992
    %994 = vmatmul.bf16.gmra.mxu0 %v830
    %v995 = vpop.f32.mrf.mxu0
    %v996 = vadd.f32 %v866, %v995
    %v997 = vpop.f32.mrf.mxu0
    %v998 = vadd.f32 %v866, %v997
    %999 = vmatmul.bf16.gmra.mxu0 %v831
    %v1000 = vpop.f32.mrf.mxu0
    %v1001 = vadd.f32 %v866, %v1000
    %v1002 = vpop.f32.mrf.mxu0
    %v1003 = vadd.f32 %v866, %v1002
    %1004 = vmatmul.bf16.gmra.mxu0 %v832
    %v1005 = vpop.f32.mrf.mxu0
    %v1006 = vadd.f32 %v866, %v1005
    %v1007 = vpop.f32.mrf.mxu0
    %v1008 = vadd.f32 %v866, %v1007
    %1009 = vmatmul.bf16.gmra.mxu0 %v833
    %v1010 = vpop.f32.mrf.mxu0
    %v1011 = vadd.f32 %v866, %v1010
    %v1012 = vpop.f32.mrf.mxu0
    %v1013 = vadd.f32 %v866, %v1012
    %1014 = vmatmul.bf16.gmra.mxu0 %v834
    %v1015 = vpop.f32.mrf.mxu0
    %v1016 = vadd.f32 %v866, %v1015
    %v1017 = vpop.f32.mrf.mxu0
    %v1018 = vadd.f32 %v866, %v1017
    %1019 = vmatmul.bf16.gmra.mxu0 %v835
    %v1020 = vpop.f32.mrf.mxu0
    %v1021 = vadd.f32 %v866, %v1020
    %v1022 = vpop.f32.mrf.mxu0
    %v1023 = vadd.f32 %v866, %v1022
    %1024 = vmatmul.bf16.gmra.mxu0 %v836
    %v1025 = vpop.f32.mrf.mxu0
    %v1026 = vadd.f32 %v866, %v1025
    %v1027 = vpop.f32.mrf.mxu0
    %v1028 = vadd.f32 %v866, %v1027
    %1029 = vmatmul.bf16.gmra.mxu0 %v837
    %v1030 = vpop.f32.mrf.mxu0
    %v1031 = vadd.f32 %v866, %v1030
    %v1032 = vpop.f32.mrf.mxu0
    %v1033 = vadd.f32 %v866, %v1032
    %1034 = vmatmul.bf16.gmra.mxu0 %v838
    %v1035 = vpop.f32.mrf.mxu0
    %v1036 = vadd.f32 %v866, %v1035
    %v1037 = vpop.f32.mrf.mxu0
    %v1038 = vadd.f32 %v866, %v1037
    %1039 = vmatmul.bf16.gmra.mxu0 %v839
    %v1040 = vpop.f32.mrf.mxu0
    %v1041 = vadd.f32 %v866, %v1040
    %v1042 = vpop.f32.mrf.mxu0
    %v1043 = vadd.f32 %v866, %v1042
    %1044 = vmatmul.bf16.gmra.mxu0 %v840
    %v1045 = vpop.f32.mrf.mxu0
    %v1046 = vadd.f32 %v866, %v1045
    %v1047 = vpop.f32.mrf.mxu0
    %v1048 = vadd.f32 %v866, %v1047
    %1049 = vmatmul.bf16.gmra.mxu0 %v841
    %v1050 = vpop.f32.mrf.mxu0
    %v1051 = vadd.f32 %v866, %v1050
    %v1052 = vpop.f32.mrf.mxu0
    %v1053 = vadd.f32 %v866, %v1052
    %1054 = vmatmul.bf16.gmra.mxu0 %v842
    %v1055 = vpop.f32.mrf.mxu0
    %v1056 = vadd.f32 %v866, %v1055
    %v1057 = vpop.f32.mrf.mxu0
    %v1058 = vadd.f32 %v866, %v1057
    %1059 = vmatmul.bf16.gmra.mxu0 %v843
    %v1060 = vpop.f32.mrf.mxu0
    %v1061 = vadd.f32 %v866, %v1060
    %v1062 = vpop.f32.mrf.mxu0
    %v1063 = vadd.f32 %v866, %v1062
    %1064 = vmatmul.bf16.gmra.mxu0 %v844
    %v1065 = vpop.f32.mrf.mxu0
    %v1066 = vadd.f32 %v866, %v1065
    %v1067 = vpop.f32.mrf.mxu0
    %v1068 = vadd.f32 %v866, %v1067
    %1069 = vmatmul.bf16.gmra.mxu0 %v845
    %v1070 = vpop.f32.mrf.mxu0
    %v1071 = vadd.f32 %v866, %v1070
    %v1072 = vpop.f32.mrf.mxu0
    %v1073 = vadd.f32 %v866, %v1072
    %1074 = vmatmul.bf16.gmra.mxu0 %v846
    %v1075 = vpop.f32.mrf.mxu0
    %v1076 = vadd.f32 %v866, %v1075
    %v1077 = vpop.f32.mrf.mxu0
    %v1078 = vadd.f32 %v866, %v1077
    %1079 = vmatmul.bf16.gmra.mxu0 %v847
    %v1080 = vpop.f32.mrf.mxu0
    %v1081 = vadd.f32 %v866, %v1080
    %v1082 = vpop.f32.mrf.mxu0
    %v1083 = vadd.f32 %v866, %v1082
    %1084 = vdwg.mxu0
    %v1085 = vmax.f32 %v926, 0.0
    %v1086 = vmax.f32 %v928, 0.0
    %v1087 = vmax.f32 %v931, 0.0
    %v1088 = vmax.f32 %v933, 0.0
    %v1089 = vmax.f32 %v936, 0.0
    %v1090 = vmax.f32 %v938, 0.0
    %v1091 = vmax.f32 %v941, 0.0
    %v1092 = vmax.f32 %v943, 0.0
    %v1093 = vmax.f32 %v946, 0.0
    %v1094 = vmax.f32 %v948, 0.0
    %v1095 = vmax.f32 %v951, 0.0
    %v1096 = vmax.f32 %v953, 0.0
    %v1097 = vmax.f32 %v956, 0.0
    %v1098 = vmax.f32 %v958, 0.0
    %v1099 = vmax.f32 %v961, 0.0
    %v1100 = vmax.f32 %v963, 0.0
    %v1101 = vmax.f32 %v966, 0.0
    %v1102 = vmax.f32 %v968, 0.0
    %v1103 = vmax.f32 %v971, 0.0
    %v1104 = vmax.f32 %v973, 0.0
    %v1105 = vmax.f32 %v976, 0.0
    %v1106 = vmax.f32 %v978, 0.0
    %v1107 = vmax.f32 %v981, 0.0
    %v1108 = vmax.f32 %v983, 0.0
    %v1109 = vmax.f32 %v986, 0.0
    %v1110 = vmax.f32 %v988, 0.0
    %v1111 = vmax.f32 %v991, 0.0
    %v1112 = vmax.f32 %v993, 0.0
    %v1113 = vmax.f32 %v996, 0.0
    %v1114 = vmax.f32 %v998, 0.0
    %v1115 = vmax.f32 %v1001, 0.0
    %v1116 = vmax.f32 %v1003, 0.0
    %v1117 = vmax.f32 %v1006, 0.0
    %v1118 = vmax.f32 %v1008, 0.0
    %v1119 = vmax.f32 %v1011, 0.0
    %v1120 = vmax.f32 %v1013, 0.0
    %v1121 = vmax.f32 %v1016, 0.0
    %v1122 = vmax.f32 %v1018, 0.0
    %v1123 = vmax.f32 %v1021, 0.0
    %v1124 = vmax.f32 %v1023, 0.0
    %v1125 = vmax.f32 %v1026, 0.0
    %v1126 = vmax.f32 %v1028, 0.0
    %v1127 = vmax.f32 %v1031, 0.0
    %v1128 = vmax.f32 %v1033, 0.0
    %v1129 = vmax.f32 %v1036, 0.0
    %v1130 = vmax.f32 %v1038, 0.0
    %v1131 = vmax.f32 %v1041, 0.0
    %v1132 = vmax.f32 %v1043, 0.0
    %v1133 = vmax.f32 %v1046, 0.0
    %v1134 = vmax.f32 %v1048, 0.0
    %v1135 = vmax.f32 %v1051, 0.0
    %v1136 = vmax.f32 %v1053, 0.0
    %v1137 = vmax.f32 %v1056, 0.0
    %v1138 = vmax.f32 %v1058, 0.0
    %v1139 = vmax.f32 %v1061, 0.0
    %v1140 = vmax.f32 %v1063, 0.0
    %v1141 = vmax.f32 %v1066, 0.0
    %v1142 = vmax.f32 %v1068, 0.0
    %v1143 = vmax.f32 %v1071, 0.0
    %v1144 = vmax.f32 %v1073, 0.0
    %v1145 = vmax.f32 %v1076, 0.0
    %v1146 = vmax.f32 %v1078, 0.0
    %v1147 = vmax.f32 %v1081, 0.0
    %v1148 = vmax.f32 %v1083, 0.0
    %v1149 = vpack.c.bf16 %v1086, %v1085
    %v1150 = vpack.c.bf16 %v1088, %v1087
    %v1151 = vpack.c.bf16 %v1090, %v1089
    %v1152 = vpack.c.bf16 %v1092, %v1091
    %v1153 = vpack.c.bf16 %v1094, %v1093
    %v1154 = vpack.c.bf16 %v1096, %v1095
    %v1155 = vpack.c.bf16 %v1098, %v1097
    %v1156 = vpack.c.bf16 %v1100, %v1099
    %v1157 = vpack.c.bf16 %v1102, %v1101
    %v1158 = vpack.c.bf16 %v1104, %v1103
    %v1159 = vpack.c.bf16 %v1106, %v1105
    %v1160 = vpack.c.bf16 %v1108, %v1107
    %v1161 = vpack.c.bf16 %v1110, %v1109
    %v1162 = vpack.c.bf16 %v1112, %v1111
    %v1163 = vpack.c.bf16 %v1114, %v1113
    %v1164 = vpack.c.bf16 %v1116, %v1115
    %v1165 = vpack.c.bf16 %v1118, %v1117
    %v1166 = vpack.c.bf16 %v1120, %v1119
    %v1167 = vpack.c.bf16 %v1122, %v1121
    %v1168 = vpack.c.bf16 %v1124, %v1123
    %v1169 = vpack.c.bf16 %v1126, %v1125
    %v1170 = vpack.c.bf16 %v1128, %v1127
    %v1171 = vpack.c.bf16 %v1130, %v1129
    %v1172 = vpack.c.bf16 %v1132, %v1131
    %v1173 = vpack.c.bf16 %v1134, %v1133
    %v1174 = vpack.c.bf16 %v1136, %v1135
    %v1175 = vpack.c.bf16 %v1138, %v1137
    %v1176 = vpack.c.bf16 %v1140, %v1139
    %v1177 = vpack.c.bf16 %v1142, %v1141
    %v1178 = vpack.c.bf16 %v1144, %v1143
    %v1179 = vpack.c.bf16 %v1146, %v1145
    %v1180 = vpack.c.bf16 %v1148, %v1147
    %v1181 = vld [vmem:[%s8] sm:$0xf]
    %v1182 = vld [vmem:[%s8 + $0x4] sm:$0xf]
    %v1183 = vld [vmem:[%s8 + $0x8] sm:$0xf]
    %v1184 = vld [vmem:[%s8 + $0xc] sm:$0xf]
    %v1185 = vld [vmem:[%s8 + $0x10] sm:$0xf]
    %v1186 = vld [vmem:[%s8 + $0x14] sm:$0xf]
    %v1187 = vld [vmem:[%s8 + $0x18] sm:$0xf]
    %v1188 = vld [vmem:[%s8 + $0x1c] sm:$0xf]
    %v1189 = vld [vmem:[%s9] sm:$0x1]
    %v1191 = vperm.slane %v1189, 0
    %v1201 = vunpack.c.l.b16 %v1181
    %v1202 = vunpack.c.l.b16 %v1182
    %v1203 = vunpack.c.l.b16 %v1183
    %v1204 = vunpack.c.l.b16 %v1184
    %v1205 = vunpack.c.l.b16 %v1185
    %v1206 = vunpack.c.l.b16 %v1186
    %v1207 = vunpack.c.l.b16 %v1187
    %v1208 = vunpack.c.l.b16 %v1188
    %v1209 = vpack.c.b16 %v1202, %v1201
    %v1210 = vpack.c.b16 %v1204, %v1203
    %v1211 = vpack.c.b16 %v1206, %v1205
    %v1212 = vpack.c.b16 %v1208, %v1207
    %vm1217 = vcmask 523264
    %v1219 = vsel %vm1217, %v1149, 0
    %v1222 = vsel %vm1217, %v1150, 0
    %v1225 = vsel %vm1217, %v1151, 0
    %v1228 = vsel %vm1217, %v1152, 0
    %v1231 = vsel %vm1217, %v1153, 0
    %v1234 = vsel %vm1217, %v1154, 0
    %v1237 = vsel %vm1217, %v1155, 0
    %v1240 = vsel %vm1217, %v1156, 0
    %v1243 = vsel %vm1217, %v1157, 0
    %v1246 = vsel %vm1217, %v1158, 0
    %v1249 = vsel %vm1217, %v1159, 0
    %v1252 = vsel %vm1217, %v1160, 0
    %v1255 = vsel %vm1217, %v1161, 0
    %v1258 = vsel %vm1217, %v1162, 0
    %v1261 = vsel %vm1217, %v1163, 0
    %v1264 = vsel %vm1217, %v1164, 0
    %v1267 = vsel %vm1217, %v1165, 0
    %v1270 = vsel %vm1217, %v1166, 0
    %v1273 = vsel %vm1217, %v1167, 0
    %v1276 = vsel %vm1217, %v1168, 0
    %v1279 = vsel %vm1217, %v1169, 0
    %v1282 = vsel %vm1217, %v1170, 0
    %v1285 = vsel %vm1217, %v1171, 0
    %v1288 = vsel %vm1217, %v1172, 0
    %v1291 = vsel %vm1217, %v1173, 0
    %v1294 = vsel %vm1217, %v1174, 0
    %v1297 = vsel %vm1217, %v1175, 0
    %v1300 = vsel %vm1217, %v1176, 0
    %v1303 = vsel %vm1217, %v1177, 0
    %v1306 = vsel %vm1217, %v1178, 0
    %v1309 = vsel %vm1217, %v1179, 0
    %v1312 = vsel %vm1217, %v1180, 0
    %1314 = vmatpush.bf16.msra.mxu0 0
    %1315 = vmatpush.bf16.msra.mxu0 0
    %1316 = vmatpush.bf16.msra.mxu0 0
    %1317 = vmatpush.bf16.msra.mxu0 0
    %1318 = vmatpush.bf16.msra.mxu0 %v1212
    %1319 = vmatpush.bf16.msra.mxu0 %v1211
    %1320 = vmatpush.bf16.msra.mxu0 %v1210
    %1321 = vmatpush.bf16.msra.mxu0 %v1209
    %1322 = vmatmul.bf16.gmra.mxu0 %v1219
    %v1323 = vpop.f32.mrf.mxu0
    %v1324 = vadd.f32 %v1191, %v1323
    %v1325 = vpop.f32.mrf.mxu0
    %v1326 = vadd.f32 %v1191, %v1325
    %1327 = vmatmul.bf16.gmra.mxu0 %v1222
    %v1328 = vpop.f32.mrf.mxu0
    %v1329 = vadd.f32 %v1191, %v1328
    %v1330 = vpop.f32.mrf.mxu0
    %v1331 = vadd.f32 %v1191, %v1330
    %1332 = vmatmul.bf16.gmra.mxu0 %v1225
    %v1333 = vpop.f32.mrf.mxu0
    %v1334 = vadd.f32 %v1191, %v1333
    %v1335 = vpop.f32.mrf.mxu0
    %v1336 = vadd.f32 %v1191, %v1335
    %1337 = vmatmul.bf16.gmra.mxu0 %v1228
    %v1338 = vpop.f32.mrf.mxu0
    %v1339 = vadd.f32 %v1191, %v1338
    %v1340 = vpop.f32.mrf.mxu0
    %v1341 = vadd.f32 %v1191, %v1340
    %1342 = vmatmul.bf16.gmra.mxu0 %v1231
    %v1343 = vpop.f32.mrf.mxu0
    %v1344 = vadd.f32 %v1191, %v1343
    %v1345 = vpop.f32.mrf.mxu0
    %v1346 = vadd.f32 %v1191, %v1345
    %1347 = vmatmul.bf16.gmra.mxu0 %v1234
    %v1348 = vpop.f32.mrf.mxu0
    %v1349 = vadd.f32 %v1191, %v1348
    %v1350 = vpop.f32.mrf.mxu0
    %v1351 = vadd.f32 %v1191, %v1350
    %1352 = vmatmul.bf16.gmra.mxu0 %v1237
    %v1353 = vpop.f32.mrf.mxu0
    %v1354 = vadd.f32 %v1191, %v1353
    %v1355 = vpop.f32.mrf.mxu0
    %v1356 = vadd.f32 %v1191, %v1355
    %1357 = vmatmul.bf16.gmra.mxu0 %v1240
    %v1358 = vpop.f32.mrf.mxu0
    %v1359 = vadd.f32 %v1191, %v1358
    %v1360 = vpop.f32.mrf.mxu0
    %v1361 = vadd.f32 %v1191, %v1360
    %1362 = vmatmul.bf16.gmra.mxu0 %v1243
    %v1363 = vpop.f32.mrf.mxu0
    %v1364 = vadd.f32 %v1191, %v1363
    %v1365 = vpop.f32.mrf.mxu0
    %v1366 = vadd.f32 %v1191, %v1365
    %1367 = vmatmul.bf16.gmra.mxu0 %v1246
    %v1368 = vpop.f32.mrf.mxu0
    %v1369 = vadd.f32 %v1191, %v1368
    %v1370 = vpop.f32.mrf.mxu0
    %v1371 = vadd.f32 %v1191, %v1370
    %1372 = vmatmul.bf16.gmra.mxu0 %v1249
    %v1373 = vpop.f32.mrf.mxu0
    %v1374 = vadd.f32 %v1191, %v1373
    %v1375 = vpop.f32.mrf.mxu0
    %v1376 = vadd.f32 %v1191, %v1375
    %1377 = vmatmul.bf16.gmra.mxu0 %v1252
    %v1378 = vpop.f32.mrf.mxu0
    %v1379 = vadd.f32 %v1191, %v1378
    %v1380 = vpop.f32.mrf.mxu0
    %v1381 = vadd.f32 %v1191, %v1380
    %1382 = vmatmul.bf16.gmra.mxu0 %v1255
    %v1383 = vpop.f32.mrf.mxu0
    %v1384 = vadd.f32 %v1191, %v1383
    %v1385 = vpop.f32.mrf.mxu0
    %v1386 = vadd.f32 %v1191, %v1385
    %1387 = vmatmul.bf16.gmra.mxu0 %v1258
    %v1388 = vpop.f32.mrf.mxu0
    %v1389 = vadd.f32 %v1191, %v1388
    %v1390 = vpop.f32.mrf.mxu0
    %v1391 = vadd.f32 %v1191, %v1390
    %1392 = vmatmul.bf16.gmra.mxu0 %v1261
    %v1393 = vpop.f32.mrf.mxu0
    %v1394 = vadd.f32 %v1191, %v1393
    %v1395 = vpop.f32.mrf.mxu0
    %v1396 = vadd.f32 %v1191, %v1395
    %1397 = vmatmul.bf16.gmra.mxu0 %v1264
    %v1398 = vpop.f32.mrf.mxu0
    %v1399 = vadd.f32 %v1191, %v1398
    %v1400 = vpop.f32.mrf.mxu0
    %v1401 = vadd.f32 %v1191, %v1400
    %1402 = vmatmul.bf16.gmra.mxu0 %v1267
    %v1403 = vpop.f32.mrf.mxu0
    %v1404 = vadd.f32 %v1191, %v1403
    %v1405 = vpop.f32.mrf.mxu0
    %v1406 = vadd.f32 %v1191, %v1405
    %1407 = vmatmul.bf16.gmra.mxu0 %v1270
    %v1408 = vpop.f32.mrf.mxu0
    %v1409 = vadd.f32 %v1191, %v1408
    %v1410 = vpop.f32.mrf.mxu0
    %v1411 = vadd.f32 %v1191, %v1410
    %1412 = vmatmul.bf16.gmra.mxu0 %v1273
    %v1413 = vpop.f32.mrf.mxu0
    %v1414 = vadd.f32 %v1191, %v1413
    %v1415 = vpop.f32.mrf.mxu0
    %v1416 = vadd.f32 %v1191, %v1415
    %1417 = vmatmul.bf16.gmra.mxu0 %v1276
    %v1418 = vpop.f32.mrf.mxu0
    %v1419 = vadd.f32 %v1191, %v1418
    %v1420 = vpop.f32.mrf.mxu0
    %v1421 = vadd.f32 %v1191, %v1420
    %1422 = vmatmul.bf16.gmra.mxu0 %v1279
    %v1423 = vpop.f32.mrf.mxu0
    %v1424 = vadd.f32 %v1191, %v1423
    %v1425 = vpop.f32.mrf.mxu0
    %v1426 = vadd.f32 %v1191, %v1425
    %1427 = vmatmul.bf16.gmra.mxu0 %v1282
    %v1428 = vpop.f32.mrf.mxu0
    %v1429 = vadd.f32 %v1191, %v1428
    %v1430 = vpop.f32.mrf.mxu0
    %v1431 = vadd.f32 %v1191, %v1430
    %1432 = vmatmul.bf16.gmra.mxu0 %v1285
    %v1433 = vpop.f32.mrf.mxu0
    %v1434 = vadd.f32 %v1191, %v1433
    %v1435 = vpop.f32.mrf.mxu0
    %v1436 = vadd.f32 %v1191, %v1435
    %1437 = vmatmul.bf16.gmra.mxu0 %v1288
    %v1438 = vpop.f32.mrf.mxu0
    %v1439 = vadd.f32 %v1191, %v1438
    %v1440 = vpop.f32.mrf.mxu0
    %v1441 = vadd.f32 %v1191, %v1440
    %1442 = vmatmul.bf16.gmra.mxu0 %v1291
    %v1443 = vpop.f32.mrf.mxu0
    %v1444 = vadd.f32 %v1191, %v1443
    %v1445 = vpop.f32.mrf.mxu0
    %v1446 = vadd.f32 %v1191, %v1445
    %1447 = vmatmul.bf16.gmra.mxu0 %v1294
    %v1448 = vpop.f32.mrf.mxu0
    %v1449 = vadd.f32 %v1191, %v1448
    %v1450 = vpop.f32.mrf.mxu0
    %v1451 = vadd.f32 %v1191, %v1450
    %1452 = vmatmul.bf16.gmra.mxu0 %v1297
    %v1453 = vpop.f32.mrf.mxu0
    %v1454 = vadd.f32 %v1191, %v1453
    %v1455 = vpop.f32.mrf.mxu0
    %v1456 = vadd.f32 %v1191, %v1455
    %1457 = vmatmul.bf16.gmra.mxu0 %v1300
    %v1458 = vpop.f32.mrf.mxu0
    %v1459 = vadd.f32 %v1191, %v1458
    %v1460 = vpop.f32.mrf.mxu0
    %v1461 = vadd.f32 %v1191, %v1460
    %1462 = vmatmul.bf16.gmra.mxu0 %v1303
    %v1463 = vpop.f32.mrf.mxu0
    %v1464 = vadd.f32 %v1191, %v1463
    %v1465 = vpop.f32.mrf.mxu0
    %v1466 = vadd.f32 %v1191, %v1465
    %1467 = vmatmul.bf16.gmra.mxu0 %v1306
    %v1468 = vpop.f32.mrf.mxu0
    %v1469 = vadd.f32 %v1191, %v1468
    %v1470 = vpop.f32.mrf.mxu0
    %v1471 = vadd.f32 %v1191, %v1470
    %1472 = vmatmul.bf16.gmra.mxu0 %v1309
    %v1473 = vpop.f32.mrf.mxu0
    %v1474 = vadd.f32 %v1191, %v1473
    %v1475 = vpop.f32.mrf.mxu0
    %v1476 = vadd.f32 %v1191, %v1475
    %1477 = vmatmul.bf16.gmra.mxu0 %v1312
    %v1478 = vpop.f32.mrf.mxu0
    %v1479 = vadd.f32 %v1191, %v1478
    %v1480 = vpop.f32.mrf.mxu0
    %v1481 = vadd.f32 %v1191, %v1480
    %1482 = vdwg.mxu0
    %v1483 = vtanh.pop %v1324
    %v1484 = vtanh.pop %v1326
    %v1485 = vtanh.pop %v1329
    %v1486 = vtanh.pop %v1331
    %v1487 = vtanh.pop %v1334
    %v1488 = vtanh.pop %v1336
    %v1489 = vtanh.pop %v1339
    %v1490 = vtanh.pop %v1341
    %v1491 = vtanh.pop %v1344
    %v1492 = vtanh.pop %v1346
    %v1493 = vtanh.pop %v1349
    %v1494 = vtanh.pop %v1351
    %v1495 = vtanh.pop %v1354
    %v1496 = vtanh.pop %v1356
    %v1497 = vtanh.pop %v1359
    %v1498 = vtanh.pop %v1361
    %v1499 = vtanh.pop %v1364
    %v1500 = vtanh.pop %v1366
    %v1501 = vtanh.pop %v1369
    %v1502 = vtanh.pop %v1371
    %v1503 = vtanh.pop %v1374
    %v1504 = vtanh.pop %v1376
    %v1505 = vtanh.pop %v1379
    %v1506 = vtanh.pop %v1381
    %v1507 = vtanh.pop %v1384
    %v1508 = vtanh.pop %v1386
    %v1509 = vtanh.pop %v1389
    %v1510 = vtanh.pop %v1391
    %v1511 = vtanh.pop %v1394
    %v1512 = vtanh.pop %v1396
    %v1513 = vtanh.pop %v1399
    %v1514 = vtanh.pop %v1401
    %v1515 = vtanh.pop %v1404
    %v1516 = vtanh.pop %v1406
    %v1517 = vtanh.pop %v1409
    %v1518 = vtanh.pop %v1411
    %v1519 = vtanh.pop %v1414
    %v1520 = vtanh.pop %v1416
    %v1521 = vtanh.pop %v1419
    %v1522 = vtanh.pop %v1421
    %v1523 = vtanh.pop %v1424
    %v1524 = vtanh.pop %v1426
    %v1525 = vtanh.pop %v1429
    %v1526 = vtanh.pop %v1431
    %v1527 = vtanh.pop %v1434
    %v1528 = vtanh.pop %v1436
    %v1529 = vtanh.pop %v1439
    %v1530 = vtanh.pop %v1441
    %v1531 = vtanh.pop %v1444
    %v1532 = vtanh.pop %v1446
    %v1533 = vtanh.pop %v1449
    %v1534 = vtanh.pop %v1451
    %v1535 = vtanh.pop %v1454
    %v1536 = vtanh.pop %v1456
    %v1537 = vtanh.pop %v1459
    %v1538 = vtanh.pop %v1461
    %v1539 = vtanh.pop %v1464
    %v1540 = vtanh.pop %v1466
    %v1541 = vtanh.pop %v1469
    %v1542 = vtanh.pop %v1471
    %v1543 = vtanh.pop %v1474
    %v1544 = vtanh.pop %v1476
    %v1545 = vtanh.pop %v1479
    %v1546 = vtanh.pop %v1481
    %v1547 = vmul.f32 %v1483, 1.442695
    %v1548 = vpow.pop %v1547
    %v1549 = vmul.f32 %v1484, 1.442695
    %v1550 = vpow.pop %v1549
    %v1551 = vmul.f32 %v1485, 1.442695
    %v1552 = vpow.pop %v1551
    %v1553 = vmul.f32 %v1486, 1.442695
    %v1554 = vpow.pop %v1553
    %v1555 = vmul.f32 %v1487, 1.442695
    %v1556 = vpow.pop %v1555
    %v1557 = vmul.f32 %v1488, 1.442695
    %v1558 = vpow.pop %v1557
    %v1559 = vmul.f32 %v1489, 1.442695
    %v1560 = vpow.pop %v1559
    %v1561 = vmul.f32 %v1490, 1.442695
    %v1562 = vpow.pop %v1561
    %v1563 = vmul.f32 %v1491, 1.442695
    %v1564 = vpow.pop %v1563
    %v1565 = vmul.f32 %v1492, 1.442695
    %v1566 = vpow.pop %v1565
    %v1567 = vmul.f32 %v1493, 1.442695
    %v1568 = vpow.pop %v1567
    %v1569 = vmul.f32 %v1494, 1.442695
    %v1570 = vpow.pop %v1569
    %v1571 = vmul.f32 %v1495, 1.442695
    %v1572 = vpow.pop %v1571
    %v1573 = vmul.f32 %v1496, 1.442695
    %v1574 = vpow.pop %v1573
    %v1575 = vmul.f32 %v1497, 1.442695
    %v1576 = vpow.pop %v1575
    %v1577 = vmul.f32 %v1498, 1.442695
    %v1578 = vpow.pop %v1577
    %v1579 = vmul.f32 %v1499, 1.442695
    %v1580 = vpow.pop %v1579
    %v1581 = vmul.f32 %v1500, 1.442695
    %v1582 = vpow.pop %v1581
    %v1583 = vmul.f32 %v1501, 1.442695
    %v1584 = vpow.pop %v1583
    %v1585 = vmul.f32 %v1502, 1.442695
    %v1586 = vpow.pop %v1585
    %v1587 = vmul.f32 %v1503, 1.442695
    %v1588 = vpow.pop %v1587
    %v1589 = vmul.f32 %v1504, 1.442695
    %v1590 = vpow.pop %v1589
    %v1591 = vmul.f32 %v1505, 1.442695
    %v1592 = vpow.pop %v1591
    %v1593 = vmul.f32 %v1506, 1.442695
    %v1594 = vpow.pop %v1593
    %v1595 = vmul.f32 %v1507, 1.442695
    %v1596 = vpow.pop %v1595
    %v1597 = vmul.f32 %v1508, 1.442695
    %v1598 = vpow.pop %v1597
    %v1599 = vmul.f32 %v1509, 1.442695
    %v1600 = vpow.pop %v1599
    %v1601 = vmul.f32 %v1510, 1.442695
    %v1602 = vpow.pop %v1601
    %v1603 = vmul.f32 %v1511, 1.442695
    %v1604 = vpow.pop %v1603
    %v1605 = vmul.f32 %v1512, 1.442695
    %v1606 = vpow.pop %v1605
    %v1607 = vmul.f32 %v1513, 1.442695
    %v1608 = vpow.pop %v1607
    %v1609 = vmul.f32 %v1514, 1.442695
    %v1610 = vpow.pop %v1609
    %v1611 = vmul.f32 %v1515, 1.442695
    %v1612 = vpow.pop %v1611
    %v1613 = vmul.f32 %v1516, 1.442695
    %v1614 = vpow.pop %v1613
    %v1615 = vmul.f32 %v1517, 1.442695
    %v1616 = vpow.pop %v1615
    %v1617 = vmul.f32 %v1518, 1.442695
    %v1618 = vpow.pop %v1617
    %v1619 = vmul.f32 %v1519, 1.442695
    %v1620 = vpow.pop %v1619
    %v1621 = vmul.f32 %v1520, 1.442695
    %v1622 = vpow.pop %v1621
    %v1623 = vmul.f32 %v1521, 1.442695
    %v1624 = vpow.pop %v1623
    %v1625 = vmul.f32 %v1522, 1.442695
    %v1626 = vpow.pop %v1625
    %v1627 = vmul.f32 %v1523, 1.442695
    %v1628 = vpow.pop %v1627
    %v1629 = vmul.f32 %v1524, 1.442695
    %v1630 = vpow.pop %v1629
    %v1631 = vmul.f32 %v1525, 1.442695
    %v1632 = vpow.pop %v1631
    %v1633 = vmul.f32 %v1526, 1.442695
    %v1634 = vpow.pop %v1633
    %v1635 = vmul.f32 %v1527, 1.442695
    %v1636 = vpow.pop %v1635
    %v1637 = vmul.f32 %v1528, 1.442695
    %v1638 = vpow.pop %v1637
    %v1639 = vmul.f32 %v1529, 1.442695
    %v1640 = vpow.pop %v1639
    %v1641 = vmul.f32 %v1530, 1.442695
    %v1642 = vpow.pop %v1641
    %v1643 = vmul.f32 %v1531, 1.442695
    %v1644 = vpow.pop %v1643
    %v1645 = vmul.f32 %v1532, 1.442695
    %v1646 = vpow.pop %v1645
    %v1647 = vmul.f32 %v1533, 1.442695
    %v1648 = vpow.pop %v1647
    %v1649 = vmul.f32 %v1534, 1.442695
    %v1650 = vpow.pop %v1649
    %v1651 = vmul.f32 %v1535, 1.442695
    %v1652 = vpow.pop %v1651
    %v1653 = vmul.f32 %v1536, 1.442695
    %v1654 = vpow.pop %v1653
    %v1655 = vmul.f32 %v1537, 1.442695
    %v1656 = vpow.pop %v1655
    %v1657 = vmul.f32 %v1538, 1.442695
    %v1658 = vpow.pop %v1657
    %v1659 = vmul.f32 %v1539, 1.442695
    %v1660 = vpow.pop %v1659
    %v1661 = vmul.f32 %v1540, 1.442695
    %v1662 = vpow.pop %v1661
    %v1663 = vmul.f32 %v1541, 1.442695
    %v1664 = vpow.pop %v1663
    %v1665 = vmul.f32 %v1542, 1.442695
    %v1666 = vpow.pop %v1665
    %v1667 = vmul.f32 %v1543, 1.442695
    %v1668 = vpow.pop %v1667
    %v1669 = vmul.f32 %v1544, 1.442695
    %v1670 = vpow.pop %v1669
    %v1671 = vmul.f32 %v1545, 1.442695
    %v1672 = vpow.pop %v1671
    %v1673 = vmul.f32 %v1546, 1.442695
    %v1674 = vpow.pop %v1673
    %v1675 = vld [vmem:[%s1] sm:$0xff]
    %v1676 = vld [vmem:[%s1 + $0x8] sm:$0xff]
    %v1677 = vld [vmem:[%s1 + $0x10] sm:$0xff]
    %v1678 = vld [vmem:[%s1 + $0x18] sm:$0xff]
    %v1679 = vld [vmem:[%s1 + $0x20] sm:$0xff]
    %v1680 = vld [vmem:[%s1 + $0x28] sm:$0xff]
    %v1681 = vld [vmem:[%s1 + $0x30] sm:$0xff]
    %v1682 = vld [vmem:[%s1 + $0x38] sm:$0xff]
    %v1683 = vld [vmem:[%s1 + $0x40] sm:$0xff]
    %v1684 = vld [vmem:[%s1 + $0x48] sm:$0xff]
    %v1685 = vld [vmem:[%s1 + $0x50] sm:$0xff]
    %v1686 = vld [vmem:[%s1 + $0x58] sm:$0xff]
    %v1687 = vld [vmem:[%s1 + $0x60] sm:$0xff]
    %v1688 = vld [vmem:[%s1 + $0x68] sm:$0xff]
    %v1689 = vld [vmem:[%s1 + $0x70] sm:$0xff]
    %v1690 = vld [vmem:[%s1 + $0x78] sm:$0xff]
    %v1691 = vld [vmem:[%s1 + $0x80] sm:$0xff]
    %v1692 = vld [vmem:[%s1 + $0x88] sm:$0xff]
    %v1693 = vld [vmem:[%s1 + $0x90] sm:$0xff]
    %v1694 = vld [vmem:[%s1 + $0x98] sm:$0xff]
    %v1695 = vld [vmem:[%s1 + $0xa0] sm:$0xff]
    %v1696 = vld [vmem:[%s1 + $0xa8] sm:$0xff]
    %v1697 = vld [vmem:[%s1 + $0xb0] sm:$0xff]
    %v1698 = vld [vmem:[%s1 + $0xb8] sm:$0xff]
    %v1699 = vld [vmem:[%s1 + $0xc0] sm:$0xff]
    %v1700 = vld [vmem:[%s1 + $0xc8] sm:$0xff]
    %v1701 = vld [vmem:[%s1 + $0xd0] sm:$0xff]
    %v1702 = vld [vmem:[%s1 + $0xd8] sm:$0xff]
    %v1703 = vld [vmem:[%s1 + $0xe0] sm:$0xff]
    %v1704 = vld [vmem:[%s1 + $0xe8] sm:$0xff]
    %v1705 = vld [vmem:[%s1 + $0xf0] sm:$0xff]
    %v1706 = vld [vmem:[%s1 + $0xf8] sm:$0xff]
    %v1707 = vld [vmem:[%s1 + $0x100] sm:$0xff]
    %v1708 = vld [vmem:[%s1 + $0x108] sm:$0xff]
    %v1709 = vld [vmem:[%s1 + $0x110] sm:$0xff]
    %v1710 = vld [vmem:[%s1 + $0x118] sm:$0xff]
    %v1711 = vld [vmem:[%s1 + $0x120] sm:$0xff]
    %v1712 = vld [vmem:[%s1 + $0x128] sm:$0xff]
    %v1713 = vld [vmem:[%s1 + $0x130] sm:$0xff]
    %v1714 = vld [vmem:[%s1 + $0x138] sm:$0xff]
    %v1715 = vld [vmem:[%s1 + $0x140] sm:$0xff]
    %v1716 = vld [vmem:[%s1 + $0x148] sm:$0xff]
    %v1717 = vld [vmem:[%s1 + $0x150] sm:$0xff]
    %v1718 = vld [vmem:[%s1 + $0x158] sm:$0xff]
    %v1719 = vld [vmem:[%s1 + $0x160] sm:$0xff]
    %v1720 = vld [vmem:[%s1 + $0x168] sm:$0xff]
    %v1721 = vld [vmem:[%s1 + $0x170] sm:$0xff]
    %v1722 = vld [vmem:[%s1 + $0x178] sm:$0xff]
    %v1723 = vld [vmem:[%s1 + $0x180] sm:$0xff]
    %v1724 = vld [vmem:[%s1 + $0x188] sm:$0xff]
    %v1725 = vld [vmem:[%s1 + $0x190] sm:$0xff]
    %v1726 = vld [vmem:[%s1 + $0x198] sm:$0xff]
    %v1727 = vld [vmem:[%s1 + $0x1a0] sm:$0xff]
    %v1728 = vld [vmem:[%s1 + $0x1a8] sm:$0xff]
    %v1729 = vld [vmem:[%s1 + $0x1b0] sm:$0xff]
    %v1730 = vld [vmem:[%s1 + $0x1b8] sm:$0xff]
    %v1731 = vld [vmem:[%s1 + $0x1c0] sm:$0xff]
    %v1732 = vld [vmem:[%s1 + $0x1c8] sm:$0xff]
    %v1733 = vld [vmem:[%s1 + $0x1d0] sm:$0xff]
    %v1734 = vld [vmem:[%s1 + $0x1d8] sm:$0xff]
    %v1735 = vld [vmem:[%s1 + $0x1e0] sm:$0xff]
    %v1736 = vld [vmem:[%s1 + $0x1e8] sm:$0xff]
    %v1737 = vld [vmem:[%s1 + $0x1f0] sm:$0xff]
    %v1738 = vld [vmem:[%s1 + $0x1f8] sm:$0xff]
    %1803 = vrot.lane.b32.xlu0 %v1675, 8
    %v1804 = vpop.permute.xlu0 %1803
    %1805 = vrot.lane.b32.xlu0 %v1676, 8
    %v1806 = vpop.permute.xlu0 %1805
    %1807 = vrot.lane.b32.xlu0 %v1677, 8
    %v1808 = vpop.permute.xlu0 %1807
    %1809 = vrot.lane.b32.xlu0 %v1678, 8
    %v1810 = vpop.permute.xlu0 %1809
    %1811 = vrot.lane.b32.xlu0 %v1679, 8
    %v1812 = vpop.permute.xlu0 %1811
    %1813 = vrot.lane.b32.xlu0 %v1680, 8
    %v1814 = vpop.permute.xlu0 %1813
    %1815 = vrot.lane.b32.xlu0 %v1681, 8
    %v1816 = vpop.permute.xlu0 %1815
    %1817 = vrot.lane.b32.xlu0 %v1682, 8
    %v1818 = vpop.permute.xlu0 %1817
    %1819 = vrot.lane.b32.xlu0 %v1683, 8
    %v1820 = vpop.permute.xlu0 %1819
    %1821 = vrot.lane.b32.xlu0 %v1684, 8
    %v1822 = vpop.permute.xlu0 %1821
    %1823 = vrot.lane.b32.xlu0 %v1685, 8
    %v1824 = vpop.permute.xlu0 %1823
    %1825 = vrot.lane.b32.xlu0 %v1686, 8
    %v1826 = vpop.permute.xlu0 %1825
    %1827 = vrot.lane.b32.xlu0 %v1687, 8
    %v1828 = vpop.permute.xlu0 %1827
    %1829 = vrot.lane.b32.xlu0 %v1688, 8
    %v1830 = vpop.permute.xlu0 %1829
    %1831 = vrot.lane.b32.xlu0 %v1689, 8
    %v1832 = vpop.permute.xlu0 %1831
    %1833 = vrot.lane.b32.xlu0 %v1690, 8
    %v1834 = vpop.permute.xlu0 %1833
    %1835 = vrot.lane.b32.xlu0 %v1691, 8
    %v1836 = vpop.permute.xlu0 %1835
    %1837 = vrot.lane.b32.xlu0 %v1692, 8
    %v1838 = vpop.permute.xlu0 %1837
    %1839 = vrot.lane.b32.xlu0 %v1693, 8
    %v1840 = vpop.permute.xlu0 %1839
    %1841 = vrot.lane.b32.xlu0 %v1694, 8
    %v1842 = vpop.permute.xlu0 %1841
    %1843 = vrot.lane.b32.xlu0 %v1695, 8
    %v1844 = vpop.permute.xlu0 %1843
    %1845 = vrot.lane.b32.xlu0 %v1696, 8
    %v1846 = vpop.permute.xlu0 %1845
    %1847 = vrot.lane.b32.xlu0 %v1697, 8
    %v1848 = vpop.permute.xlu0 %1847
    %1849 = vrot.lane.b32.xlu0 %v1698, 8
    %v1850 = vpop.permute.xlu0 %1849
    %1851 = vrot.lane.b32.xlu0 %v1699, 8
    %v1852 = vpop.permute.xlu0 %1851
    %1853 = vrot.lane.b32.xlu0 %v1700, 8
    %v1854 = vpop.permute.xlu0 %1853
    %1855 = vrot.lane.b32.xlu0 %v1701, 8
    %v1856 = vpop.permute.xlu0 %1855
    %1857 = vrot.lane.b32.xlu0 %v1702, 8
    %v1858 = vpop.permute.xlu0 %1857
    %1859 = vrot.lane.b32.xlu0 %v1703, 8
    %v1860 = vpop.permute.xlu0 %1859
    %1861 = vrot.lane.b32.xlu0 %v1704, 8
    %v1862 = vpop.permute.xlu0 %1861
    %1863 = vrot.lane.b32.xlu0 %v1705, 8
    %v1864 = vpop.permute.xlu0 %1863
    %1865 = vrot.lane.b32.xlu0 %v1706, 8
    %v1866 = vpop.permute.xlu0 %1865
    %1867 = vrot.lane.b32.xlu0 %v1707, 8
    %v1868 = vpop.permute.xlu0 %1867
    %1869 = vrot.lane.b32.xlu0 %v1708, 8
    %v1870 = vpop.permute.xlu0 %1869
    %1871 = vrot.lane.b32.xlu0 %v1709, 8
    %v1872 = vpop.permute.xlu0 %1871
    %1873 = vrot.lane.b32.xlu0 %v1710, 8
    %v1874 = vpop.permute.xlu0 %1873
    %1875 = vrot.lane.b32.xlu0 %v1711, 8
    %v1876 = vpop.permute.xlu0 %1875
    %1877 = vrot.lane.b32.xlu0 %v1712, 8
    %v1878 = vpop.permute.xlu0 %1877
    %1879 = vrot.lane.b32.xlu0 %v1713, 8
    %v1880 = vpop.permute.xlu0 %1879
    %1881 = vrot.lane.b32.xlu0 %v1714, 8
    %v1882 = vpop.permute.xlu0 %1881
    %1883 = vrot.lane.b32.xlu0 %v1715, 8
    %v1884 = vpop.permute.xlu0 %1883
    %1885 = vrot.lane.b32.xlu0 %v1716, 8
    %v1886 = vpop.permute.xlu0 %1885
    %1887 = vrot.lane.b32.xlu0 %v1717, 8
    %v1888 = vpop.permute.xlu0 %1887
    %1889 = vrot.lane.b32.xlu0 %v1718, 8
    %v1890 = vpop.permute.xlu0 %1889
    %1891 = vrot.lane.b32.xlu0 %v1719, 8
    %v1892 = vpop.permute.xlu0 %1891
    %1893 = vrot.lane.b32.xlu0 %v1720, 8
    %v1894 = vpop.permute.xlu0 %1893
    %1895 = vrot.lane.b32.xlu0 %v1721, 8
    %v1896 = vpop.permute.xlu0 %1895
    %1897 = vrot.lane.b32.xlu0 %v1722, 8
    %v1898 = vpop.permute.xlu0 %1897
    %1899 = vrot.lane.b32.xlu0 %v1723, 8
    %v1900 = vpop.permute.xlu0 %1899
    %1901 = vrot.lane.b32.xlu0 %v1724, 8
    %v1902 = vpop.permute.xlu0 %1901
    %1903 = vrot.lane.b32.xlu0 %v1725, 8
    %v1904 = vpop.permute.xlu0 %1903
    %1905 = vrot.lane.b32.xlu0 %v1726, 8
    %v1906 = vpop.permute.xlu0 %1905
    %1907 = vrot.lane.b32.xlu0 %v1727, 8
    %v1908 = vpop.permute.xlu0 %1907
    %1909 = vrot.lane.b32.xlu0 %v1728, 8
    %v1910 = vpop.permute.xlu0 %1909
    %1911 = vrot.lane.b32.xlu0 %v1729, 8
    %v1912 = vpop.permute.xlu0 %1911
    %1913 = vrot.lane.b32.xlu0 %v1730, 8
    %v1914 = vpop.permute.xlu0 %1913
    %1915 = vrot.lane.b32.xlu0 %v1731, 8
    %v1916 = vpop.permute.xlu0 %1915
    %1917 = vrot.lane.b32.xlu0 %v1732, 8
    %v1918 = vpop.permute.xlu0 %1917
    %1919 = vrot.lane.b32.xlu0 %v1733, 8
    %v1920 = vpop.permute.xlu0 %1919
    %1921 = vrot.lane.b32.xlu0 %v1734, 8
    %v1922 = vpop.permute.xlu0 %1921
    %1923 = vrot.lane.b32.xlu0 %v1735, 8
    %v1924 = vpop.permute.xlu0 %1923
    %1925 = vrot.lane.b32.xlu0 %v1736, 8
    %v1926 = vpop.permute.xlu0 %1925
    %1927 = vrot.lane.b32.xlu0 %v1737, 8
    %v1928 = vpop.permute.xlu0 %1927
    %1929 = vrot.lane.b32.xlu0 %v1738, 8
    %v1930 = vpop.permute.xlu0 %1929
    %v1995 = vmul.f32 %v1548, %v1804
    %v1996 = vmul.f32 %v1550, %v1806
    %v1997 = vmul.f32 %v1552, %v1808
    %v1998 = vmul.f32 %v1554, %v1810
    %v1999 = vmul.f32 %v1556, %v1812
    %v2000 = vmul.f32 %v1558, %v1814
    %v2001 = vmul.f32 %v1560, %v1816
    %v2002 = vmul.f32 %v1562, %v1818
    %v2003 = vmul.f32 %v1564, %v1820
    %v2004 = vmul.f32 %v1566, %v1822
    %v2005 = vmul.f32 %v1568, %v1824
    %v2006 = vmul.f32 %v1570, %v1826
    %v2007 = vmul.f32 %v1572, %v1828
    %v2008 = vmul.f32 %v1574, %v1830
    %v2009 = vmul.f32 %v1576, %v1832
    %v2010 = vmul.f32 %v1578, %v1834
    %v2011 = vmul.f32 %v1580, %v1836
    %v2012 = vmul.f32 %v1582, %v1838
    %v2013 = vmul.f32 %v1584, %v1840
    %v2014 = vmul.f32 %v1586, %v1842
    %v2015 = vmul.f32 %v1588, %v1844
    %v2016 = vmul.f32 %v1590, %v1846
    %v2017 = vmul.f32 %v1592, %v1848
    %v2018 = vmul.f32 %v1594, %v1850
    %v2019 = vmul.f32 %v1596, %v1852
    %v2020 = vmul.f32 %v1598, %v1854
    %v2021 = vmul.f32 %v1600, %v1856
    %v2022 = vmul.f32 %v1602, %v1858
    %v2023 = vmul.f32 %v1604, %v1860
    %v2024 = vmul.f32 %v1606, %v1862
    %v2025 = vmul.f32 %v1608, %v1864
    %v2026 = vmul.f32 %v1610, %v1866
    %v2027 = vmul.f32 %v1612, %v1868
    %v2028 = vmul.f32 %v1614, %v1870
    %v2029 = vmul.f32 %v1616, %v1872
    %v2030 = vmul.f32 %v1618, %v1874
    %v2031 = vmul.f32 %v1620, %v1876
    %v2032 = vmul.f32 %v1622, %v1878
    %v2033 = vmul.f32 %v1624, %v1880
    %v2034 = vmul.f32 %v1626, %v1882
    %v2035 = vmul.f32 %v1628, %v1884
    %v2036 = vmul.f32 %v1630, %v1886
    %v2037 = vmul.f32 %v1632, %v1888
    %v2038 = vmul.f32 %v1634, %v1890
    %v2039 = vmul.f32 %v1636, %v1892
    %v2040 = vmul.f32 %v1638, %v1894
    %v2041 = vmul.f32 %v1640, %v1896
    %v2042 = vmul.f32 %v1642, %v1898
    %v2043 = vmul.f32 %v1644, %v1900
    %v2044 = vmul.f32 %v1646, %v1902
    %v2045 = vmul.f32 %v1648, %v1904
    %v2046 = vmul.f32 %v1650, %v1906
    %v2047 = vmul.f32 %v1652, %v1908
    %v2048 = vmul.f32 %v1654, %v1910
    %v2049 = vmul.f32 %v1656, %v1912
    %v2050 = vmul.f32 %v1658, %v1914
    %v2051 = vmul.f32 %v1660, %v1916
    %v2052 = vmul.f32 %v1662, %v1918
    %v2053 = vmul.f32 %v1664, %v1920
    %v2054 = vmul.f32 %v1666, %v1922
    %v2055 = vmul.f32 %v1668, %v1924
    %v2056 = vmul.f32 %v1670, %v1926
    %v2057 = vmul.f32 %v1672, %v1928
    %v2058 = vmul.f32 %v1674, %v1930
    %2123 = vrot.lane.b32.xlu0 %v1995, 120
    %v2124 = vpop.permute.xlu0 %2123
    %2125 = vrot.lane.b32.xlu0 %v1996, 120
    %v2126 = vpop.permute.xlu0 %2125
    %2127 = vrot.lane.b32.xlu0 %v1997, 120
    %v2128 = vpop.permute.xlu0 %2127
    %2129 = vrot.lane.b32.xlu0 %v1998, 120
    %v2130 = vpop.permute.xlu0 %2129
    %2131 = vrot.lane.b32.xlu0 %v1999, 120
    %v2132 = vpop.permute.xlu0 %2131
    %2133 = vrot.lane.b32.xlu0 %v2000, 120
    %v2134 = vpop.permute.xlu0 %2133
    %2135 = vrot.lane.b32.xlu0 %v2001, 120
    %v2136 = vpop.permute.xlu0 %2135
    %2137 = vrot.lane.b32.xlu0 %v2002, 120
    %v2138 = vpop.permute.xlu0 %2137
    %2139 = vrot.lane.b32.xlu0 %v2003, 120
    %v2140 = vpop.permute.xlu0 %2139
    %2141 = vrot.lane.b32.xlu0 %v2004, 120
    %v2142 = vpop.permute.xlu0 %2141
    %2143 = vrot.lane.b32.xlu0 %v2005, 120
    %v2144 = vpop.permute.xlu0 %2143
    %2145 = vrot.lane.b32.xlu0 %v2006, 120
    %v2146 = vpop.permute.xlu0 %2145
    %2147 = vrot.lane.b32.xlu0 %v2007, 120
    %v2148 = vpop.permute.xlu0 %2147
    %2149 = vrot.lane.b32.xlu0 %v2008, 120
    %v2150 = vpop.permute.xlu0 %2149
    %2151 = vrot.lane.b32.xlu0 %v2009, 120
    %v2152 = vpop.permute.xlu0 %2151
    %2153 = vrot.lane.b32.xlu0 %v2010, 120
    %v2154 = vpop.permute.xlu0 %2153
    %2155 = vrot.lane.b32.xlu0 %v2011, 120
    %v2156 = vpop.permute.xlu0 %2155
    %2157 = vrot.lane.b32.xlu0 %v2012, 120
    %v2158 = vpop.permute.xlu0 %2157
    %2159 = vrot.lane.b32.xlu0 %v2013, 120
    %v2160 = vpop.permute.xlu0 %2159
    %2161 = vrot.lane.b32.xlu0 %v2014, 120
    %v2162 = vpop.permute.xlu0 %2161
    %2163 = vrot.lane.b32.xlu0 %v2015, 120
    %v2164 = vpop.permute.xlu0 %2163
    %2165 = vrot.lane.b32.xlu0 %v2016, 120
    %v2166 = vpop.permute.xlu0 %2165
    %2167 = vrot.lane.b32.xlu0 %v2017, 120
    %v2168 = vpop.permute.xlu0 %2167
    %2169 = vrot.lane.b32.xlu0 %v2018, 120
    %v2170 = vpop.permute.xlu0 %2169
    %2171 = vrot.lane.b32.xlu0 %v2019, 120
    %v2172 = vpop.permute.xlu0 %2171
    %2173 = vrot.lane.b32.xlu0 %v2020, 120
    %v2174 = vpop.permute.xlu0 %2173
    %2175 = vrot.lane.b32.xlu0 %v2021, 120
    %v2176 = vpop.permute.xlu0 %2175
    %2177 = vrot.lane.b32.xlu0 %v2022, 120
    %v2178 = vpop.permute.xlu0 %2177
    %2179 = vrot.lane.b32.xlu0 %v2023, 120
    %v2180 = vpop.permute.xlu0 %2179
    %2181 = vrot.lane.b32.xlu0 %v2024, 120
    %v2182 = vpop.permute.xlu0 %2181
    %2183 = vrot.lane.b32.xlu0 %v2025, 120
    %v2184 = vpop.permute.xlu0 %2183
    %2185 = vrot.lane.b32.xlu0 %v2026, 120
    %v2186 = vpop.permute.xlu0 %2185
    %2187 = vrot.lane.b32.xlu0 %v2027, 120
    %v2188 = vpop.permute.xlu0 %2187
    %2189 = vrot.lane.b32.xlu0 %v2028, 120
    %v2190 = vpop.permute.xlu0 %2189
    %2191 = vrot.lane.b32.xlu0 %v2029, 120
    %v2192 = vpop.permute.xlu0 %2191
    %2193 = vrot.lane.b32.xlu0 %v2030, 120
    %v2194 = vpop.permute.xlu0 %2193
    %2195 = vrot.lane.b32.xlu0 %v2031, 120
    %v2196 = vpop.permute.xlu0 %2195
    %2197 = vrot.lane.b32.xlu0 %v2032, 120
    %v2198 = vpop.permute.xlu0 %2197
    %2199 = vrot.lane.b32.xlu0 %v2033, 120
    %v2200 = vpop.permute.xlu0 %2199
    %2201 = vrot.lane.b32.xlu0 %v2034, 120
    %v2202 = vpop.permute.xlu0 %2201
    %2203 = vrot.lane.b32.xlu0 %v2035, 120
    %v2204 = vpop.permute.xlu0 %2203
    %2205 = vrot.lane.b32.xlu0 %v2036, 120
    %v2206 = vpop.permute.xlu0 %2205
    %2207 = vrot.lane.b32.xlu0 %v2037, 120
    %v2208 = vpop.permute.xlu0 %2207
    %2209 = vrot.lane.b32.xlu0 %v2038, 120
    %v2210 = vpop.permute.xlu0 %2209
    %2211 = vrot.lane.b32.xlu0 %v2039, 120
    %v2212 = vpop.permute.xlu0 %2211
    %2213 = vrot.lane.b32.xlu0 %v2040, 120
    %v2214 = vpop.permute.xlu0 %2213
    %2215 = vrot.lane.b32.xlu0 %v2041, 120
    %v2216 = vpop.permute.xlu0 %2215
    %2217 = vrot.lane.b32.xlu0 %v2042, 120
    %v2218 = vpop.permute.xlu0 %2217
    %2219 = vrot.lane.b32.xlu0 %v2043, 120
    %v2220 = vpop.permute.xlu0 %2219
    %2221 = vrot.lane.b32.xlu0 %v2044, 120
    %v2222 = vpop.permute.xlu0 %2221
    %2223 = vrot.lane.b32.xlu0 %v2045, 120
    %v2224 = vpop.permute.xlu0 %2223
    %2225 = vrot.lane.b32.xlu0 %v2046, 120
    %v2226 = vpop.permute.xlu0 %2225
    %2227 = vrot.lane.b32.xlu0 %v2047, 120
    %v2228 = vpop.permute.xlu0 %2227
    %2229 = vrot.lane.b32.xlu0 %v2048, 120
    %v2230 = vpop.permute.xlu0 %2229
    %2231 = vrot.lane.b32.xlu0 %v2049, 120
    %v2232 = vpop.permute.xlu0 %2231
    %2233 = vrot.lane.b32.xlu0 %v2050, 120
    %v2234 = vpop.permute.xlu0 %2233
    %2235 = vrot.lane.b32.xlu0 %v2051, 120
    %v2236 = vpop.permute.xlu0 %2235
    %2237 = vrot.lane.b32.xlu0 %v2052, 120
    %v2238 = vpop.permute.xlu0 %2237
    %2239 = vrot.lane.b32.xlu0 %v2053, 120
    %v2240 = vpop.permute.xlu0 %2239
    %2241 = vrot.lane.b32.xlu0 %v2054, 120
    %v2242 = vpop.permute.xlu0 %2241
    %2243 = vrot.lane.b32.xlu0 %v2055, 120
    %v2244 = vpop.permute.xlu0 %2243
    %2245 = vrot.lane.b32.xlu0 %v2056, 120
    %v2246 = vpop.permute.xlu0 %2245
    %2247 = vrot.lane.b32.xlu0 %v2057, 120
    %v2248 = vpop.permute.xlu0 %2247
    %2249 = vrot.lane.b32.xlu0 %v2058, 120
    %v2250 = vpop.permute.xlu0 %2249
    %v2315 = vadd.f32 %v1483, %v2124
    %v2316 = vadd.f32 %v1484, %v2126
    %v2317 = vadd.f32 %v1485, %v2128
    %v2318 = vadd.f32 %v1486, %v2130
    %v2319 = vadd.f32 %v1487, %v2132
    %v2320 = vadd.f32 %v1488, %v2134
    %v2321 = vadd.f32 %v1489, %v2136
    %v2322 = vadd.f32 %v1490, %v2138
    %v2323 = vadd.f32 %v1491, %v2140
    %v2324 = vadd.f32 %v1492, %v2142
    %v2325 = vadd.f32 %v1493, %v2144
    %v2326 = vadd.f32 %v1494, %v2146
    %v2327 = vadd.f32 %v1495, %v2148
    %v2328 = vadd.f32 %v1496, %v2150
    %v2329 = vadd.f32 %v1497, %v2152
    %v2330 = vadd.f32 %v1498, %v2154
    %v2331 = vadd.f32 %v1499, %v2156
    %v2332 = vadd.f32 %v1500, %v2158
    %v2333 = vadd.f32 %v1501, %v2160
    %v2334 = vadd.f32 %v1502, %v2162
    %v2335 = vadd.f32 %v1503, %v2164
    %v2336 = vadd.f32 %v1504, %v2166
    %v2337 = vadd.f32 %v1505, %v2168
    %v2338 = vadd.f32 %v1506, %v2170
    %v2339 = vadd.f32 %v1507, %v2172
    %v2340 = vadd.f32 %v1508, %v2174
    %v2341 = vadd.f32 %v1509, %v2176
    %v2342 = vadd.f32 %v1510, %v2178
    %v2343 = vadd.f32 %v1511, %v2180
    %v2344 = vadd.f32 %v1512, %v2182
    %v2345 = vadd.f32 %v1513, %v2184
    %v2346 = vadd.f32 %v1514, %v2186
    %v2347 = vadd.f32 %v1515, %v2188
    %v2348 = vadd.f32 %v1516, %v2190
    %v2349 = vadd.f32 %v1517, %v2192
    %v2350 = vadd.f32 %v1518, %v2194
    %v2351 = vadd.f32 %v1519, %v2196
    %v2352 = vadd.f32 %v1520, %v2198
    %v2353 = vadd.f32 %v1521, %v2200
    %v2354 = vadd.f32 %v1522, %v2202
    %v2355 = vadd.f32 %v1523, %v2204
    %v2356 = vadd.f32 %v1524, %v2206
    %v2357 = vadd.f32 %v1525, %v2208
    %v2358 = vadd.f32 %v1526, %v2210
    %v2359 = vadd.f32 %v1527, %v2212
    %v2360 = vadd.f32 %v1528, %v2214
    %v2361 = vadd.f32 %v1529, %v2216
    %v2362 = vadd.f32 %v1530, %v2218
    %v2363 = vadd.f32 %v1531, %v2220
    %v2364 = vadd.f32 %v1532, %v2222
    %v2365 = vadd.f32 %v1533, %v2224
    %v2366 = vadd.f32 %v1534, %v2226
    %v2367 = vadd.f32 %v1535, %v2228
    %v2368 = vadd.f32 %v1536, %v2230
    %v2369 = vadd.f32 %v1537, %v2232
    %v2370 = vadd.f32 %v1538, %v2234
    %v2371 = vadd.f32 %v1539, %v2236
    %v2372 = vadd.f32 %v1540, %v2238
    %v2373 = vadd.f32 %v1541, %v2240
    %v2374 = vadd.f32 %v1542, %v2242
    %v2375 = vadd.f32 %v1543, %v2244
    %v2376 = vadd.f32 %v1544, %v2246
    %v2377 = vadd.f32 %v1545, %v2248
    %v2378 = vadd.f32 %v1546, %v2250
    %vm2379 = vcmask 64512
    %2380 = vst.msk [vmem:[#allocation2] sm:$0xff] %vm2379, %v2315
    %2381 = vst.msk [vmem:[#allocation2 + $0x8] sm:$0xff] %vm2379, %v2316
    %2382 = vst.msk [vmem:[#allocation2 + $0x10] sm:$0xff] %vm2379, %v2317
    %2383 = vst.msk [vmem:[#allocation2 + $0x18] sm:$0xff] %vm2379, %v2318
    %2384 = vst.msk [vmem:[#allocation2 + $0x20] sm:$0xff] %vm2379, %v2319
    %2385 = vst.msk [vmem:[#allocation2 + $0x28] sm:$0xff] %vm2379, %v2320
    %2386 = vst.msk [vmem:[#allocation2 + $0x30] sm:$0xff] %vm2379, %v2321
    %2387 = vst.msk [vmem:[#allocation2 + $0x38] sm:$0xff] %vm2379, %v2322
    %2388 = vst.msk [vmem:[#allocation2 + $0x40] sm:$0xff] %vm2379, %v2323
    %2389 = vst.msk [vmem:[#allocation2 + $0x48] sm:$0xff] %vm2379, %v2324
    %2390 = vst.msk [vmem:[#allocation2 + $0x50] sm:$0xff] %vm2379, %v2325
    %2391 = vst.msk [vmem:[#allocation2 + $0x58] sm:$0xff] %vm2379, %v2326
    %2392 = vst.msk [vmem:[#allocation2 + $0x60] sm:$0xff] %vm2379, %v2327
    %2393 = vst.msk [vmem:[#allocation2 + $0x68] sm:$0xff] %vm2379, %v2328
    %2394 = vst.msk [vmem:[#allocation2 + $0x70] sm:$0xff] %vm2379, %v2329
    %2395 = vst.msk [vmem:[#allocation2 + $0x78] sm:$0xff] %vm2379, %v2330
    %2396 = vst.msk [vmem:[#allocation2 + $0x80] sm:$0xff] %vm2379, %v2331
    %2397 = vst.msk [vmem:[#allocation2 + $0x88] sm:$0xff] %vm2379, %v2332
    %2398 = vst.msk [vmem:[#allocation2 + $0x90] sm:$0xff] %vm2379, %v2333
    %2399 = vst.msk [vmem:[#allocation2 + $0x98] sm:$0xff] %vm2379, %v2334
    %2400 = vst.msk [vmem:[#allocation2 + $0xa0] sm:$0xff] %vm2379, %v2335
    %2401 = vst.msk [vmem:[#allocation2 + $0xa8] sm:$0xff] %vm2379, %v2336
    %2402 = vst.msk [vmem:[#allocation2 + $0xb0] sm:$0xff] %vm2379, %v2337
    %2403 = vst.msk [vmem:[#allocation2 + $0xb8] sm:$0xff] %vm2379, %v2338
    %2404 = vst.msk [vmem:[#allocation2 + $0xc0] sm:$0xff] %vm2379, %v2339
    %2405 = vst.msk [vmem:[#allocation2 + $0xc8] sm:$0xff] %vm2379, %v2340
    %2406 = vst.msk [vmem:[#allocation2 + $0xd0] sm:$0xff] %vm2379, %v2341
    %2407 = vst.msk [vmem:[#allocation2 + $0xd8] sm:$0xff] %vm2379, %v2342
    %2408 = vst.msk [vmem:[#allocation2 + $0xe0] sm:$0xff] %vm2379, %v2343
    %2409 = vst.msk [vmem:[#allocation2 + $0xe8] sm:$0xff] %vm2379, %v2344
    %2410 = vst.msk [vmem:[#allocation2 + $0xf0] sm:$0xff] %vm2379, %v2345
    %2411 = vst.msk [vmem:[#allocation2 + $0xf8] sm:$0xff] %vm2379, %v2346
    %2412 = vst.msk [vmem:[#allocation2 + $0x100] sm:$0xff] %vm2379, %v2347
    %2413 = vst.msk [vmem:[#allocation2 + $0x108] sm:$0xff] %vm2379, %v2348
    %2414 = vst.msk [vmem:[#allocation2 + $0x110] sm:$0xff] %vm2379, %v2349
    %2415 = vst.msk [vmem:[#allocation2 + $0x118] sm:$0xff] %vm2379, %v2350
    %2416 = vst.msk [vmem:[#allocation2 + $0x120] sm:$0xff] %vm2379, %v2351
    %2417 = vst.msk [vmem:[#allocation2 + $0x128] sm:$0xff] %vm2379, %v2352
    %2418 = vst.msk [vmem:[#allocation2 + $0x130] sm:$0xff] %vm2379, %v2353
    %2419 = vst.msk [vmem:[#allocation2 + $0x138] sm:$0xff] %vm2379, %v2354
    %2420 = vst.msk [vmem:[#allocation2 + $0x140] sm:$0xff] %vm2379, %v2355
    %2421 = vst.msk [vmem:[#allocation2 + $0x148] sm:$0xff] %vm2379, %v2356
    %2422 = vst.msk [vmem:[#allocation2 + $0x150] sm:$0xff] %vm2379, %v2357
    %2423 = vst.msk [vmem:[#allocation2 + $0x158] sm:$0xff] %vm2379, %v2358
    %2424 = vst.msk [vmem:[#allocation2 + $0x160] sm:$0xff] %vm2379, %v2359
    %2425 = vst.msk [vmem:[#allocation2 + $0x168] sm:$0xff] %vm2379, %v2360
    %2426 = vst.msk [vmem:[#allocation2 + $0x170] sm:$0xff] %vm2379, %v2361
    %2427 = vst.msk [vmem:[#allocation2 + $0x178] sm:$0xff] %vm2379, %v2362
    %2428 = vst.msk [vmem:[#allocation2 + $0x180] sm:$0xff] %vm2379, %v2363
    %2429 = vst.msk [vmem:[#allocation2 + $0x188] sm:$0xff] %vm2379, %v2364
    %2430 = vst.msk [vmem:[#allocation2 + $0x190] sm:$0xff] %vm2379, %v2365
    %2431 = vst.msk [vmem:[#allocation2 + $0x198] sm:$0xff] %vm2379, %v2366
    %2432 = vst.msk [vmem:[#allocation2 + $0x1a0] sm:$0xff] %vm2379, %v2367
    %2433 = vst.msk [vmem:[#allocation2 + $0x1a8] sm:$0xff] %vm2379, %v2368
    %2434 = vst.msk [vmem:[#allocation2 + $0x1b0] sm:$0xff] %vm2379, %v2369
    %2435 = vst.msk [vmem:[#allocation2 + $0x1b8] sm:$0xff] %vm2379, %v2370
    %2436 = vst.msk [vmem:[#allocation2 + $0x1c0] sm:$0xff] %vm2379, %v2371
    %2437 = vst.msk [vmem:[#allocation2 + $0x1c8] sm:$0xff] %vm2379, %v2372
    %2438 = vst.msk [vmem:[#allocation2 + $0x1d0] sm:$0xff] %vm2379, %v2373
    %2439 = vst.msk [vmem:[#allocation2 + $0x1d8] sm:$0xff] %vm2379, %v2374
    %2440 = vst.msk [vmem:[#allocation2 + $0x1e0] sm:$0xff] %vm2379, %v2375
    %2441 = vst.msk [vmem:[#allocation2 + $0x1e8] sm:$0xff] %vm2379, %v2376
    %2442 = vst.msk [vmem:[#allocation2 + $0x1f0] sm:$0xff] %vm2379, %v2377
    %2443 = vst.msk [vmem:[#allocation2 + $0x1f8] sm:$0xff] %vm2379, %v2378
    %2508 = vrot.lane.b32.xlu0 %v1483, 8
    %v2509 = vpop.permute.xlu0 %2508
    %2510 = vrot.lane.b32.xlu0 %v1484, 8
    %v2511 = vpop.permute.xlu0 %2510
    %2512 = vrot.lane.b32.xlu0 %v1485, 8
    %v2513 = vpop.permute.xlu0 %2512
    %2514 = vrot.lane.b32.xlu0 %v1486, 8
    %v2515 = vpop.permute.xlu0 %2514
    %2516 = vrot.lane.b32.xlu0 %v1487, 8
    %v2517 = vpop.permute.xlu0 %2516
    %2518 = vrot.lane.b32.xlu0 %v1488, 8
    %v2519 = vpop.permute.xlu0 %2518
    %2520 = vrot.lane.b32.xlu0 %v1489, 8
    %v2521 = vpop.permute.xlu0 %2520
    %2522 = vrot.lane.b32.xlu0 %v1490, 8
    %v2523 = vpop.permute.xlu0 %2522
    %2524 = vrot.lane.b32.xlu0 %v1491, 8
    %v2525 = vpop.permute.xlu0 %2524
    %2526 = vrot.lane.b32.xlu0 %v1492, 8
    %v2527 = vpop.permute.xlu0 %2526
    %2528 = vrot.lane.b32.xlu0 %v1493, 8
    %v2529 = vpop.permute.xlu0 %2528
    %2530 = vrot.lane.b32.xlu0 %v1494, 8
    %v2531 = vpop.permute.xlu0 %2530
    %2532 = vrot.lane.b32.xlu0 %v1495, 8
    %v2533 = vpop.permute.xlu0 %2532
    %2534 = vrot.lane.b32.xlu0 %v1496, 8
    %v2535 = vpop.permute.xlu0 %2534
    %2536 = vrot.lane.b32.xlu0 %v1497, 8
    %v2537 = vpop.permute.xlu0 %2536
    %2538 = vrot.lane.b32.xlu0 %v1498, 8
    %v2539 = vpop.permute.xlu0 %2538
    %2540 = vrot.lane.b32.xlu0 %v1499, 8
    %v2541 = vpop.permute.xlu0 %2540
    %2542 = vrot.lane.b32.xlu0 %v1500, 8
    %v2543 = vpop.permute.xlu0 %2542
    %2544 = vrot.lane.b32.xlu0 %v1501, 8
    %v2545 = vpop.permute.xlu0 %2544
    %2546 = vrot.lane.b32.xlu0 %v1502, 8
    %v2547 = vpop.permute.xlu0 %2546
    %2548 = vrot.lane.b32.xlu0 %v1503, 8
    %v2549 = vpop.permute.xlu0 %2548
    %2550 = vrot.lane.b32.xlu0 %v1504, 8
    %v2551 = vpop.permute.xlu0 %2550
    %2552 = vrot.lane.b32.xlu0 %v1505, 8
    %v2553 = vpop.permute.xlu0 %2552
    %2554 = vrot.lane.b32.xlu0 %v1506, 8
    %v2555 = vpop.permute.xlu0 %2554
    %2556 = vrot.lane.b32.xlu0 %v1507, 8
    %v2557 = vpop.permute.xlu0 %2556
    %2558 = vrot.lane.b32.xlu0 %v1508, 8
    %v2559 = vpop.permute.xlu0 %2558
    %2560 = vrot.lane.b32.xlu0 %v1509, 8
    %v2561 = vpop.permute.xlu0 %2560
    %2562 = vrot.lane.b32.xlu0 %v1510, 8
    %v2563 = vpop.permute.xlu0 %2562
    %2564 = vrot.lane.b32.xlu0 %v1511, 8
    %v2565 = vpop.permute.xlu0 %2564
    %2566 = vrot.lane.b32.xlu0 %v1512, 8
    %v2567 = vpop.permute.xlu0 %2566
    %2568 = vrot.lane.b32.xlu0 %v1513, 8
    %v2569 = vpop.permute.xlu0 %2568
    %2570 = vrot.lane.b32.xlu0 %v1514, 8
    %v2571 = vpop.permute.xlu0 %2570
    %2572 = vrot.lane.b32.xlu0 %v1515, 8
    %v2573 = vpop.permute.xlu0 %2572
    %2574 = vrot.lane.b32.xlu0 %v1516, 8
    %v2575 = vpop.permute.xlu0 %2574
    %2576 = vrot.lane.b32.xlu0 %v1517, 8
    %v2577 = vpop.permute.xlu0 %2576
    %2578 = vrot.lane.b32.xlu0 %v1518, 8
    %v2579 = vpop.permute.xlu0 %2578
    %2580 = vrot.lane.b32.xlu0 %v1519, 8
    %v2581 = vpop.permute.xlu0 %2580
    %2582 = vrot.lane.b32.xlu0 %v1520, 8
    %v2583 = vpop.permute.xlu0 %2582
    %2584 = vrot.lane.b32.xlu0 %v1521, 8
    %v2585 = vpop.permute.xlu0 %2584
    %2586 = vrot.lane.b32.xlu0 %v1522, 8
    %v2587 = vpop.permute.xlu0 %2586
    %2588 = vrot.lane.b32.xlu0 %v1523, 8
    %v2589 = vpop.permute.xlu0 %2588
    %2590 = vrot.lane.b32.xlu0 %v1524, 8
    %v2591 = vpop.permute.xlu0 %2590
    %2592 = vrot.lane.b32.xlu0 %v1525, 8
    %v2593 = vpop.permute.xlu0 %2592
    %2594 = vrot.lane.b32.xlu0 %v1526, 8
    %v2595 = vpop.permute.xlu0 %2594
    %2596 = vrot.lane.b32.xlu0 %v1527, 8
    %v2597 = vpop.permute.xlu0 %2596
    %2598 = vrot.lane.b32.xlu0 %v1528, 8
    %v2599 = vpop.permute.xlu0 %2598
    %2600 = vrot.lane.b32.xlu0 %v1529, 8
    %v2601 = vpop.permute.xlu0 %2600
    %2602 = vrot.lane.b32.xlu0 %v1530, 8
    %v2603 = vpop.permute.xlu0 %2602
    %2604 = vrot.lane.b32.xlu0 %v1531, 8
    %v2605 = vpop.permute.xlu0 %2604
    %2606 = vrot.lane.b32.xlu0 %v1532, 8
    %v2607 = vpop.permute.xlu0 %2606
    %2608 = vrot.lane.b32.xlu0 %v1533, 8
    %v2609 = vpop.permute.xlu0 %2608
    %2610 = vrot.lane.b32.xlu0 %v1534, 8
    %v2611 = vpop.permute.xlu0 %2610
    %2612 = vrot.lane.b32.xlu0 %v1535, 8
    %v2613 = vpop.permute.xlu0 %2612
    %2614 = vrot.lane.b32.xlu0 %v1536, 8
    %v2615 = vpop.permute.xlu0 %2614
    %2616 = vrot.lane.b32.xlu0 %v1537, 8
    %v2617 = vpop.permute.xlu0 %2616
    %2618 = vrot.lane.b32.xlu0 %v1538, 8
    %v2619 = vpop.permute.xlu0 %2618
    %2620 = vrot.lane.b32.xlu0 %v1539, 8
    %v2621 = vpop.permute.xlu0 %2620
    %2622 = vrot.lane.b32.xlu0 %v1540, 8
    %v2623 = vpop.permute.xlu0 %2622
    %2624 = vrot.lane.b32.xlu0 %v1541, 8
    %v2625 = vpop.permute.xlu0 %2624
    %2626 = vrot.lane.b32.xlu0 %v1542, 8
    %v2627 = vpop.permute.xlu0 %2626
    %2628 = vrot.lane.b32.xlu0 %v1543, 8
    %v2629 = vpop.permute.xlu0 %2628
    %2630 = vrot.lane.b32.xlu0 %v1544, 8
    %v2631 = vpop.permute.xlu0 %2630
    %2632 = vrot.lane.b32.xlu0 %v1545, 8
    %v2633 = vpop.permute.xlu0 %2632
    %2634 = vrot.lane.b32.xlu0 %v1546, 8
    %v2635 = vpop.permute.xlu0 %2634
    %vm2700 = vcmask 130112
    %2701 = vst.msk [vmem:[#allocation2] sm:$0xff] %vm2700, %v2509
    %2702 = vst.msk [vmem:[#allocation2 + $0x8] sm:$0xff] %vm2700, %v2511
    %2703 = vst.msk [vmem:[#allocation2 + $0x10] sm:$0xff] %vm2700, %v2513
    %2704 = vst.msk [vmem:[#allocation2 + $0x18] sm:$0xff] %vm2700, %v2515
    %2705 = vst.msk [vmem:[#allocation2 + $0x20] sm:$0xff] %vm2700, %v2517
    %2706 = vst.msk [vmem:[#allocation2 + $0x28] sm:$0xff] %vm2700, %v2519
    %2707 = vst.msk [vmem:[#allocation2 + $0x30] sm:$0xff] %vm2700, %v2521
    %2708 = vst.msk [vmem:[#allocation2 + $0x38] sm:$0xff] %vm2700, %v2523
    %2709 = vst.msk [vmem:[#allocation2 + $0x40] sm:$0xff] %vm2700, %v2525
    %2710 = vst.msk [vmem:[#allocation2 + $0x48] sm:$0xff] %vm2700, %v2527
    %2711 = vst.msk [vmem:[#allocation2 + $0x50] sm:$0xff] %vm2700, %v2529
    %2712 = vst.msk [vmem:[#allocation2 + $0x58] sm:$0xff] %vm2700, %v2531
    %2713 = vst.msk [vmem:[#allocation2 + $0x60] sm:$0xff] %vm2700, %v2533
    %2714 = vst.msk [vmem:[#allocation2 + $0x68] sm:$0xff] %vm2700, %v2535
    %2715 = vst.msk [vmem:[#allocation2 + $0x70] sm:$0xff] %vm2700, %v2537
    %2716 = vst.msk [vmem:[#allocation2 + $0x78] sm:$0xff] %vm2700, %v2539
    %2717 = vst.msk [vmem:[#allocation2 + $0x80] sm:$0xff] %vm2700, %v2541
    %2718 = vst.msk [vmem:[#allocation2 + $0x88] sm:$0xff] %vm2700, %v2543
    %2719 = vst.msk [vmem:[#allocation2 + $0x90] sm:$0xff] %vm2700, %v2545
    %2720 = vst.msk [vmem:[#allocation2 + $0x98] sm:$0xff] %vm2700, %v2547
    %2721 = vst.msk [vmem:[#allocation2 + $0xa0] sm:$0xff] %vm2700, %v2549
    %2722 = vst.msk [vmem:[#allocation2 + $0xa8] sm:$0xff] %vm2700, %v2551
    %2723 = vst.msk [vmem:[#allocation2 + $0xb0] sm:$0xff] %vm2700, %v2553
    %2724 = vst.msk [vmem:[#allocation2 + $0xb8] sm:$0xff] %vm2700, %v2555
    %2725 = vst.msk [vmem:[#allocation2 + $0xc0] sm:$0xff] %vm2700, %v2557
    %2726 = vst.msk [vmem:[#allocation2 + $0xc8] sm:$0xff] %vm2700, %v2559
    %2727 = vst.msk [vmem:[#allocation2 + $0xd0] sm:$0xff] %vm2700, %v2561
    %2728 = vst.msk [vmem:[#allocation2 + $0xd8] sm:$0xff] %vm2700, %v2563
    %2729 = vst.msk [vmem:[#allocation2 + $0xe0] sm:$0xff] %vm2700, %v2565
    %2730 = vst.msk [vmem:[#allocation2 + $0xe8] sm:$0xff] %vm2700, %v2567
    %2731 = vst.msk [vmem:[#allocation2 + $0xf0] sm:$0xff] %vm2700, %v2569
    %2732 = vst.msk [vmem:[#allocation2 + $0xf8] sm:$0xff] %vm2700, %v2571
    %2733 = vst.msk [vmem:[#allocation2 + $0x100] sm:$0xff] %vm2700, %v2573
    %2734 = vst.msk [vmem:[#allocation2 + $0x108] sm:$0xff] %vm2700, %v2575
    %2735 = vst.msk [vmem:[#allocation2 + $0x110] sm:$0xff] %vm2700, %v2577
    %2736 = vst.msk [vmem:[#allocation2 + $0x118] sm:$0xff] %vm2700, %v2579
    %2737 = vst.msk [vmem:[#allocation2 + $0x120] sm:$0xff] %vm2700, %v2581
    %2738 = vst.msk [vmem:[#allocation2 + $0x128] sm:$0xff] %vm2700, %v2583
    %2739 = vst.msk [vmem:[#allocation2 + $0x130] sm:$0xff] %vm2700, %v2585
    %2740 = vst.msk [vmem:[#allocation2 + $0x138] sm:$0xff] %vm2700, %v2587
    %2741 = vst.msk [vmem:[#allocation2 + $0x140] sm:$0xff] %vm2700, %v2589
    %2742 = vst.msk [vmem:[#allocation2 + $0x148] sm:$0xff] %vm2700, %v2591
    %2743 = vst.msk [vmem:[#allocation2 + $0x150] sm:$0xff] %vm2700, %v2593
    %2744 = vst.msk [vmem:[#allocation2 + $0x158] sm:$0xff] %vm2700, %v2595
    %2745 = vst.msk [vmem:[#allocation2 + $0x160] sm:$0xff] %vm2700, %v2597
    %2746 = vst.msk [vmem:[#allocation2 + $0x168] sm:$0xff] %vm2700, %v2599
    %2747 = vst.msk [vmem:[#allocation2 + $0x170] sm:$0xff] %vm2700, %v2601
    %2748 = vst.msk [vmem:[#allocation2 + $0x178] sm:$0xff] %vm2700, %v2603
    %2749 = vst.msk [vmem:[#allocation2 + $0x180] sm:$0xff] %vm2700, %v2605
    %2750 = vst.msk [vmem:[#allocation2 + $0x188] sm:$0xff] %vm2700, %v2607
    %2751 = vst.msk [vmem:[#allocation2 + $0x190] sm:$0xff] %vm2700, %v2609
    %2752 = vst.msk [vmem:[#allocation2 + $0x198] sm:$0xff] %vm2700, %v2611
    %2753 = vst.msk [vmem:[#allocation2 + $0x1a0] sm:$0xff] %vm2700, %v2613
    %2754 = vst.msk [vmem:[#allocation2 + $0x1a8] sm:$0xff] %vm2700, %v2615
    %2755 = vst.msk [vmem:[#allocation2 + $0x1b0] sm:$0xff] %vm2700, %v2617
    %2756 = vst.msk [vmem:[#allocation2 + $0x1b8] sm:$0xff] %vm2700, %v2619
    %2757 = vst.msk [vmem:[#allocation2 + $0x1c0] sm:$0xff] %vm2700, %v2621
    %2758 = vst.msk [vmem:[#allocation2 + $0x1c8] sm:$0xff] %vm2700, %v2623
    %2759 = vst.msk [vmem:[#allocation2 + $0x1d0] sm:$0xff] %vm2700, %v2625
    %2760 = vst.msk [vmem:[#allocation2 + $0x1d8] sm:$0xff] %vm2700, %v2627
    %2761 = vst.msk [vmem:[#allocation2 + $0x1e0] sm:$0xff] %vm2700, %v2629
    %2762 = vst.msk [vmem:[#allocation2 + $0x1e8] sm:$0xff] %vm2700, %v2631
    %2763 = vst.msk [vmem:[#allocation2 + $0x1f0] sm:$0xff] %vm2700, %v2633
    %2764 = vst.msk [vmem:[#allocation2 + $0x1f8] sm:$0xff] %vm2700, %v2635
    %2829 = vrot.lane.b32.xlu0 %v1548, 8
    %v2830 = vpop.permute.xlu0 %2829
    %2831 = vrot.lane.b32.xlu0 %v1550, 8
    %v2832 = vpop.permute.xlu0 %2831
    %2833 = vrot.lane.b32.xlu0 %v1552, 8
    %v2834 = vpop.permute.xlu0 %2833
    %2835 = vrot.lane.b32.xlu0 %v1554, 8
    %v2836 = vpop.permute.xlu0 %2835
    %2837 = vrot.lane.b32.xlu0 %v1556, 8
    %v2838 = vpop.permute.xlu0 %2837
    %2839 = vrot.lane.b32.xlu0 %v1558, 8
    %v2840 = vpop.permute.xlu0 %2839
    %2841 = vrot.lane.b32.xlu0 %v1560, 8
    %v2842 = vpop.permute.xlu0 %2841
    %2843 = vrot.lane.b32.xlu0 %v1562, 8
    %v2844 = vpop.permute.xlu0 %2843
    %2845 = vrot.lane.b32.xlu0 %v1564, 8
    %v2846 = vpop.permute.xlu0 %2845
    %2847 = vrot.lane.b32.xlu0 %v1566, 8
    %v2848 = vpop.permute.xlu0 %2847
    %2849 = vrot.lane.b32.xlu0 %v1568, 8
    %v2850 = vpop.permute.xlu0 %2849
    %2851 = vrot.lane.b32.xlu0 %v1570, 8
    %v2852 = vpop.permute.xlu0 %2851
    %2853 = vrot.lane.b32.xlu0 %v1572, 8
    %v2854 = vpop.permute.xlu0 %2853
    %2855 = vrot.lane.b32.xlu0 %v1574, 8
    %v2856 = vpop.permute.xlu0 %2855
    %2857 = vrot.lane.b32.xlu0 %v1576, 8
    %v2858 = vpop.permute.xlu0 %2857
    %2859 = vrot.lane.b32.xlu0 %v1578, 8
    %v2860 = vpop.permute.xlu0 %2859
    %2861 = vrot.lane.b32.xlu0 %v1580, 8
    %v2862 = vpop.permute.xlu0 %2861
    %2863 = vrot.lane.b32.xlu0 %v1582, 8
    %v2864 = vpop.permute.xlu0 %2863
    %2865 = vrot.lane.b32.xlu0 %v1584, 8
    %v2866 = vpop.permute.xlu0 %2865
    %2867 = vrot.lane.b32.xlu0 %v1586, 8
    %v2868 = vpop.permute.xlu0 %2867
    %2869 = vrot.lane.b32.xlu0 %v1588, 8
    %v2870 = vpop.permute.xlu0 %2869
    %2871 = vrot.lane.b32.xlu0 %v1590, 8
    %v2872 = vpop.permute.xlu0 %2871
    %2873 = vrot.lane.b32.xlu0 %v1592, 8
    %v2874 = vpop.permute.xlu0 %2873
    %2875 = vrot.lane.b32.xlu0 %v1594, 8
    %v2876 = vpop.permute.xlu0 %2875
    %2877 = vrot.lane.b32.xlu0 %v1596, 8
    %v2878 = vpop.permute.xlu0 %2877
    %2879 = vrot.lane.b32.xlu0 %v1598, 8
    %v2880 = vpop.permute.xlu0 %2879
    %2881 = vrot.lane.b32.xlu0 %v1600, 8
    %v2882 = vpop.permute.xlu0 %2881
    %2883 = vrot.lane.b32.xlu0 %v1602, 8
    %v2884 = vpop.permute.xlu0 %2883
    %2885 = vrot.lane.b32.xlu0 %v1604, 8
    %v2886 = vpop.permute.xlu0 %2885
    %2887 = vrot.lane.b32.xlu0 %v1606, 8
    %v2888 = vpop.permute.xlu0 %2887
    %2889 = vrot.lane.b32.xlu0 %v1608, 8
    %v2890 = vpop.permute.xlu0 %2889
    %2891 = vrot.lane.b32.xlu0 %v1610, 8
    %v2892 = vpop.permute.xlu0 %2891
    %2893 = vrot.lane.b32.xlu0 %v1612, 8
    %v2894 = vpop.permute.xlu0 %2893
    %2895 = vrot.lane.b32.xlu0 %v1614, 8
    %v2896 = vpop.permute.xlu0 %2895
    %2897 = vrot.lane.b32.xlu0 %v1616, 8
    %v2898 = vpop.permute.xlu0 %2897
    %2899 = vrot.lane.b32.xlu0 %v1618, 8
    %v2900 = vpop.permute.xlu0 %2899
    %2901 = vrot.lane.b32.xlu0 %v1620, 8
    %v2902 = vpop.permute.xlu0 %2901
    %2903 = vrot.lane.b32.xlu0 %v1622, 8
    %v2904 = vpop.permute.xlu0 %2903
    %2905 = vrot.lane.b32.xlu0 %v1624, 8
    %v2906 = vpop.permute.xlu0 %2905
    %2907 = vrot.lane.b32.xlu0 %v1626, 8
    %v2908 = vpop.permute.xlu0 %2907
    %2909 = vrot.lane.b32.xlu0 %v1628, 8
    %v2910 = vpop.permute.xlu0 %2909
    %2911 = vrot.lane.b32.xlu0 %v1630, 8
    %v2912 = vpop.permute.xlu0 %2911
    %2913 = vrot.lane.b32.xlu0 %v1632, 8
    %v2914 = vpop.permute.xlu0 %2913
    %2915 = vrot.lane.b32.xlu0 %v1634, 8
    %v2916 = vpop.permute.xlu0 %2915
    %2917 = vrot.lane.b32.xlu0 %v1636, 8
    %v2918 = vpop.permute.xlu0 %2917
    %2919 = vrot.lane.b32.xlu0 %v1638, 8
    %v2920 = vpop.permute.xlu0 %2919
    %2921 = vrot.lane.b32.xlu0 %v1640, 8
    %v2922 = vpop.permute.xlu0 %2921
    %2923 = vrot.lane.b32.xlu0 %v1642, 8
    %v2924 = vpop.permute.xlu0 %2923
    %2925 = vrot.lane.b32.xlu0 %v1644, 8
    %v2926 = vpop.permute.xlu0 %2925
    %2927 = vrot.lane.b32.xlu0 %v1646, 8
    %v2928 = vpop.permute.xlu0 %2927
    %2929 = vrot.lane.b32.xlu0 %v1648, 8
    %v2930 = vpop.permute.xlu0 %2929
    %2931 = vrot.lane.b32.xlu0 %v1650, 8
    %v2932 = vpop.permute.xlu0 %2931
    %2933 = vrot.lane.b32.xlu0 %v1652, 8
    %v2934 = vpop.permute.xlu0 %2933
    %2935 = vrot.lane.b32.xlu0 %v1654, 8
    %v2936 = vpop.permute.xlu0 %2935
    %2937 = vrot.lane.b32.xlu0 %v1656, 8
    %v2938 = vpop.permute.xlu0 %2937
    %2939 = vrot.lane.b32.xlu0 %v1658, 8
    %v2940 = vpop.permute.xlu0 %2939
    %2941 = vrot.lane.b32.xlu0 %v1660, 8
    %v2942 = vpop.permute.xlu0 %2941
    %2943 = vrot.lane.b32.xlu0 %v1662, 8
    %v2944 = vpop.permute.xlu0 %2943
    %2945 = vrot.lane.b32.xlu0 %v1664, 8
    %v2946 = vpop.permute.xlu0 %2945
    %2947 = vrot.lane.b32.xlu0 %v1666, 8
    %v2948 = vpop.permute.xlu0 %2947
    %2949 = vrot.lane.b32.xlu0 %v1668, 8
    %v2950 = vpop.permute.xlu0 %2949
    %2951 = vrot.lane.b32.xlu0 %v1670, 8
    %v2952 = vpop.permute.xlu0 %2951
    %2953 = vrot.lane.b32.xlu0 %v1672, 8
    %v2954 = vpop.permute.xlu0 %2953
    %2955 = vrot.lane.b32.xlu0 %v1674, 8
    %v2956 = vpop.permute.xlu0 %2955
    %vm3021 = vcmask 195712
    %3022 = vst.msk [vmem:[#allocation2] sm:$0xff] %vm3021, %v2830
    %3023 = vst.msk [vmem:[#allocation2 + $0x8] sm:$0xff] %vm3021, %v2832
    %3024 = vst.msk [vmem:[#allocation2 + $0x10] sm:$0xff] %vm3021, %v2834
    %3025 = vst.msk [vmem:[#allocation2 + $0x18] sm:$0xff] %vm3021, %v2836
    %3026 = vst.msk [vmem:[#allocation2 + $0x20] sm:$0xff] %vm3021, %v2838
    %3027 = vst.msk [vmem:[#allocation2 + $0x28] sm:$0xff] %vm3021, %v2840
    %3028 = vst.msk [vmem:[#allocation2 + $0x30] sm:$0xff] %vm3021, %v2842
    %3029 = vst.msk [vmem:[#allocation2 + $0x38] sm:$0xff] %vm3021, %v2844
    %3030 = vst.msk [vmem:[#allocation2 + $0x40] sm:$0xff] %vm3021, %v2846
    %3031 = vst.msk [vmem:[#allocation2 + $0x48] sm:$0xff] %vm3021, %v2848
    %3032 = vst.msk [vmem:[#allocation2 + $0x50] sm:$0xff] %vm3021, %v2850
    %3033 = vst.msk [vmem:[#allocation2 + $0x58] sm:$0xff] %vm3021, %v2852
    %3034 = vst.msk [vmem:[#allocation2 + $0x60] sm:$0xff] %vm3021, %v2854
    %3035 = vst.msk [vmem:[#allocation2 + $0x68] sm:$0xff] %vm3021, %v2856
    %3036 = vst.msk [vmem:[#allocation2 + $0x70] sm:$0xff] %vm3021, %v2858
    %3037 = vst.msk [vmem:[#allocation2 + $0x78] sm:$0xff] %vm3021, %v2860
    %3038 = vst.msk [vmem:[#allocation2 + $0x80] sm:$0xff] %vm3021, %v2862
    %3039 = vst.msk [vmem:[#allocation2 + $0x88] sm:$0xff] %vm3021, %v2864
    %3040 = vst.msk [vmem:[#allocation2 + $0x90] sm:$0xff] %vm3021, %v2866
    %3041 = vst.msk [vmem:[#allocation2 + $0x98] sm:$0xff] %vm3021, %v2868
    %3042 = vst.msk [vmem:[#allocation2 + $0xa0] sm:$0xff] %vm3021, %v2870
    %3043 = vst.msk [vmem:[#allocation2 + $0xa8] sm:$0xff] %vm3021, %v2872
    %3044 = vst.msk [vmem:[#allocation2 + $0xb0] sm:$0xff] %vm3021, %v2874
    %3045 = vst.msk [vmem:[#allocation2 + $0xb8] sm:$0xff] %vm3021, %v2876
    %3046 = vst.msk [vmem:[#allocation2 + $0xc0] sm:$0xff] %vm3021, %v2878
    %3047 = vst.msk [vmem:[#allocation2 + $0xc8] sm:$0xff] %vm3021, %v2880
    %3048 = vst.msk [vmem:[#allocation2 + $0xd0] sm:$0xff] %vm3021, %v2882
    %3049 = vst.msk [vmem:[#allocation2 + $0xd8] sm:$0xff] %vm3021, %v2884
    %3050 = vst.msk [vmem:[#allocation2 + $0xe0] sm:$0xff] %vm3021, %v2886
    %3051 = vst.msk [vmem:[#allocation2 + $0xe8] sm:$0xff] %vm3021, %v2888
    %3052 = vst.msk [vmem:[#allocation2 + $0xf0] sm:$0xff] %vm3021, %v2890
    %3053 = vst.msk [vmem:[#allocation2 + $0xf8] sm:$0xff] %vm3021, %v2892
    %3054 = vst.msk [vmem:[#allocation2 + $0x100] sm:$0xff] %vm3021, %v2894
    %3055 = vst.msk [vmem:[#allocation2 + $0x108] sm:$0xff] %vm3021, %v2896
    %3056 = vst.msk [vmem:[#allocation2 + $0x110] sm:$0xff] %vm3021, %v2898
    %3057 = vst.msk [vmem:[#allocation2 + $0x118] sm:$0xff] %vm3021, %v2900
    %3058 = vst.msk [vmem:[#allocation2 + $0x120] sm:$0xff] %vm3021, %v2902
    %3059 = vst.msk [vmem:[#allocation2 + $0x128] sm:$0xff] %vm3021, %v2904
    %3060 = vst.msk [vmem:[#allocation2 + $0x130] sm:$0xff] %vm3021, %v2906
    %3061 = vst.msk [vmem:[#allocation2 + $0x138] sm:$0xff] %vm3021, %v2908
    %3062 = vst.msk [vmem:[#allocation2 + $0x140] sm:$0xff] %vm3021, %v2910
    %3063 = vst.msk [vmem:[#allocation2 + $0x148] sm:$0xff] %vm3021, %v2912
    %3064 = vst.msk [vmem:[#allocation2 + $0x150] sm:$0xff] %vm3021, %v2914
    %3065 = vst.msk [vmem:[#allocation2 + $0x158] sm:$0xff] %vm3021, %v2916
    %3066 = vst.msk [vmem:[#allocation2 + $0x160] sm:$0xff] %vm3021, %v2918
    %3067 = vst.msk [vmem:[#allocation2 + $0x168] sm:$0xff] %vm3021, %v2920
    %3068 = vst.msk [vmem:[#allocation2 + $0x170] sm:$0xff] %vm3021, %v2922
    %3069 = vst.msk [vmem:[#allocation2 + $0x178] sm:$0xff] %vm3021, %v2924
    %3070 = vst.msk [vmem:[#allocation2 + $0x180] sm:$0xff] %vm3021, %v2926
    %3071 = vst.msk [vmem:[#allocation2 + $0x188] sm:$0xff] %vm3021, %v2928
    %3072 = vst.msk [vmem:[#allocation2 + $0x190] sm:$0xff] %vm3021, %v2930
    %3073 = vst.msk [vmem:[#allocation2 + $0x198] sm:$0xff] %vm3021, %v2932
    %3074 = vst.msk [vmem:[#allocation2 + $0x1a0] sm:$0xff] %vm3021, %v2934
    %3075 = vst.msk [vmem:[#allocation2 + $0x1a8] sm:$0xff] %vm3021, %v2936
    %3076 = vst.msk [vmem:[#allocation2 + $0x1b0] sm:$0xff] %vm3021, %v2938
    %3077 = vst.msk [vmem:[#allocation2 + $0x1b8] sm:$0xff] %vm3021, %v2940
    %3078 = vst.msk [vmem:[#allocation2 + $0x1c0] sm:$0xff] %vm3021, %v2942
    %3079 = vst.msk [vmem:[#allocation2 + $0x1c8] sm:$0xff] %vm3021, %v2944
    %3080 = vst.msk [vmem:[#allocation2 + $0x1d0] sm:$0xff] %vm3021, %v2946
    %3081 = vst.msk [vmem:[#allocation2 + $0x1d8] sm:$0xff] %vm3021, %v2948
    %3082 = vst.msk [vmem:[#allocation2 + $0x1e0] sm:$0xff] %vm3021, %v2950
    %3083 = vst.msk [vmem:[#allocation2 + $0x1e8] sm:$0xff] %vm3021, %v2952
    %3084 = vst.msk [vmem:[#allocation2 + $0x1f0] sm:$0xff] %vm3021, %v2954
    %3085 = vst.msk [vmem:[#allocation2 + $0x1f8] sm:$0xff] %vm3021, %v2956
    // Predicated region
    $region42: #{tpu_custom_call.1} parent=1 // pred_check
      _
    $region43: #{tpu_custom_call.1} parent=1 // pred_check_branch
      %3087 = sbr.rel (0) target = $region45
    $region44: #{tpu_custom_call.1} parent=1 // pred_region
      %3089 = vsyncadd [#allocation3], 0
      %s3090 = sshll.u32 [#allocation2], 4
      %s3091 = int_to_ptr.vmem [resolvable:$true] %s3090
      %s3092 = sshll.u32 %s10, 4
      %s3093 = int_to_ptr.hbm [resolvable:$true] %s3092
      %3098 = dma.vmem_to_hbm [thread:$0]  %s3091, 8192, %s3093, [#allocation3], 128, 128, 8
    $region45: #{tpu_custom_call.1} parent=1 // pred_fallthru
      _
    // Predicated region
    $region46: #{tpu_custom_call.1} parent=1 // pred_check
      _
    $region47: #{tpu_custom_call.1} parent=1 // pred_check_branch
      %3100 = sbr.rel (0) target = $region49
    $region48: #{tpu_custom_call.1} parent=1 // pred_region
      %3102 = dma.done [#allocation3], 8192
    $region49: #{tpu_custom_call.1} parent=1 // pred_fallthru
      _
    %3103 = vsyncpa [#allocation3], 1

</llo_original>
